<compile_context>
chip_gen: v6e
topology: v6e:2x2x1
jax: 0.10.0
libtpu: 0.0.40
codegen_flags: <defaults>
</compile_context>

<pallas_src>
import jax
import jax.numpy as jnp
from jax.experimental import pallas as pl
from jax.experimental.pallas import tpu as pltpu


def _round_up(x, m):
    return (x + m - 1) // m * m


def _pick_row_tile(Ho, Wo, max_pixels=1024):
    """Largest divisor of Ho with TH*Wo <= max_pixels (bounds the f32
    accumulator and im2col scratch per grid step); split once more if that
    leaves a single row tile so v7x's 2nd TensorCore gets work even at N=1."""
    th = 1
    for d in range(1, Ho + 1):
        if Ho % d == 0 and d * Wo <= max_pixels:
            th = d
    if th == Ho and Ho % 2 == 0 and Ho > 1:
        th = Ho // 2
    return th


def _make_conv_relu_kernel(KH, KW):
    def kernel(*args):
        x_refs = args[:KH]                       # KH x (1, TH, Wp, Cin_pad) bf16
        w_ref, b_ref, o_ref, patch_ref = args[KH:]
        _, TH, Wp, Cin_pad = x_refs[0].shape
        _, _, Wo, Cout_pad = o_ref.shape

        # ---- im2col into a VMEM scratch: (TH*Wo, KH*KW*Cin_pad) -----------
        # Tap (kh, kw) is a width-shifted window of the kh-row-shifted view;
        # taps are packed along the feature (lane) axis so one fat MXU matmul
        # replaces KH*KW skinny K=Cin dots.
        for kh in range(KH):
            xk = x_refs[kh][0]                               # (TH, Wp, Cin_pad)
            for kw in range(KW):
                tap = kh * KW + kw
                piece = xk[:, kw:kw + Wo, :].reshape(TH * Wo, Cin_pad)
                patch_ref[:, tap * Cin_pad:(tap + 1) * Cin_pad] = piece

        # ---- single MXU matmul, f32 accumulation ---------------------------
        acc = jnp.dot(patch_ref[...], w_ref[...],
                      preferred_element_type=jnp.float32)    # (TH*Wo, Cout_pad)
        acc = jnp.maximum(acc + b_ref[...], 0.0)             # bias + ReLU (f32)

        # Lane-dense store: Cout_pad is a multiple of 128 -> unmasked vst.
        o_ref[0] = acc.reshape(TH, Wo, Cout_pad).astype(o_ref.dtype)

    return kernel


def conv_relu(x_nchw, weight_oihw, bias, *, stride=1, padding=1):
    """Forward pass of the Conv module (Conv2d(k, s=1, p) + ReLU).

    x_nchw:      (N, Cin, H, W)     -- PyTorch layout
    weight_oihw: (Cout, Cin, KH, KW)
    bias:        (Cout,)
    returns:     (N, Cout, Ho, Wo)  -- PyTorch layout
    """
    assert stride == 1, "kernel implements the module's default stride=1 path"
    N, Cin, H, W = x_nchw.shape
    Cout, _, KH, KW = weight_oihw.shape
    Hp, Wp = H + 2 * padding, W + 2 * padding
    Ho, Wo = Hp - KH + 1, Wp - KW + 1

    Cin_pad = _round_up(Cin, 8)        # aligned width-8 lane slices in im2col
    Cout_pad = _round_up(Cout, 128)    # lane-dense output stores
    KF = KH * KW * Cin_pad

    # NCHW -> NHWC, spatial zero-pad + channel zero-pad, bf16 operands.
    x_nhwc = jnp.transpose(x_nchw, (0, 2, 3, 1))
    x_pad = jnp.pad(x_nhwc, ((0, 0), (padding, padding), (padding, padding),
                             (0, Cin_pad - Cin))).astype(jnp.bfloat16)

    # KH row-shifted views of the padded input: view kh holds padded rows
    # [kh, kh + Ho).  The block of view kh at row-tile t is exactly the set of
    # rows tap-row kh needs for output rows [t*TH, (t+1)*TH) -> no overlapping
    # (halo) blocks needed; everything stays on the auto-pipelined path.
    x_views = [x_pad[:, kh:kh + Ho, :, :] for kh in range(KH)]

    # (Cout, Cin, KH, KW) -> (KH, KW, Cin_pad, Cout_pad) -> (KF, Cout_pad)
    w_hwio = jnp.transpose(weight_oihw, (2, 3, 1, 0))
    w_hwio = jnp.pad(w_hwio, ((0, 0), (0, 0),
                              (0, Cin_pad - Cin), (0, Cout_pad - Cout)))
    w_flat = w_hwio.reshape(KF, Cout_pad).astype(jnp.bfloat16)
    b_pad = jnp.pad(bias, (0, Cout_pad - Cout)).reshape(1, Cout_pad)
    b_pad = b_pad.astype(jnp.float32)

    TH = _pick_row_tile(Ho, Wo)
    grid = (N, Ho // TH)

    kernel = _make_conv_relu_kernel(KH, KW)
    out_padded = pl.pallas_call(
        kernel,
        out_shape=jax.ShapeDtypeStruct((N, Ho, Wo, Cout_pad), x_nchw.dtype),
        grid_spec=pltpu.PrefetchScalarGridSpec(
            num_scalar_prefetch=0,
            grid=grid,
            in_specs=(
                [pl.BlockSpec((1, TH, Wp, Cin_pad), lambda n, t: (n, t, 0, 0))
                 for _ in range(KH)]
                + [pl.BlockSpec((KF, Cout_pad), lambda n, t: (0, 0)),
                   pl.BlockSpec((1, Cout_pad), lambda n, t: (0, 0))]),
            out_specs=pl.BlockSpec((1, TH, Wo, Cout_pad),
                                   lambda n, t: (n, t, 0, 0)),
            scratch_shapes=[pltpu.VMEM((TH * Wo, KF), jnp.bfloat16)],
        ),
        compiler_params=pltpu.CompilerParams(
            dimension_semantics=("parallel", "parallel"),
            vmem_limit_bytes=64 * 1024 * 1024),
    )(*x_views, w_flat, b_pad)

    # Drop the Cout padding and return PyTorch NCHW (slice + transpose fuse).
    return jnp.transpose(out_padded[..., :Cout], (0, 3, 1, 2))


def init_conv_params(key, in_channel, out_channel, kernel_size):
    """Deterministic kaiming_normal_(mode='fan_out', nonlinearity='relu'); bias=0."""
    fan_out = out_channel * kernel_size * kernel_size
    std = (2.0 / fan_out) ** 0.5
    w = std * jax.random.normal(
        key, (out_channel, in_channel, kernel_size, kernel_size),
        dtype=jnp.float32)
    b = jnp.zeros((out_channel,), dtype=jnp.float32)
    return w, b


if __name__ == "__main__":
    # Small shapes consistent with the module's forward (Conv2d k=3,s=1,p=1 + ReLU).
    N, Cin, Cout, H, W, K = 2, 4, 8, 16, 16, 3

    key = jax.random.PRNGKey(0)
    kx, kparam = jax.random.split(key)
    x = jax.random.normal(kx, (N, Cin, H, W), dtype=jnp.float32)
    weight, bias = init_conv_params(kparam, Cin, Cout, K)

    conv = jax.jit(conv_relu)
    out = jax.block_until_ready(conv(x, weight, bias))

    # Reference: same bf16-rounded operands, full-precision conv + ReLU.
    x_bf = x.astype(jnp.bfloat16).astype(jnp.float32)
    w_bf = weight.astype(jnp.bfloat16).astype(jnp.float32)
    ref = jax.lax.conv_general_dilated(
        x_bf, w_bf, window_strides=(1, 1), padding=((1, 1), (1, 1)),
        dimension_numbers=("NCHW", "OIHW", "NCHW"),
        precision=jax.lax.Precision.HIGHEST)
    ref = jnp.maximum(ref + bias.reshape(1, Cout, 1, 1), 0.0)

    assert out.shape == (N, Cout, H, W)
    assert jnp.allclose(out, ref, atol=1e-3, rtol=1e-3)
    print("KERNEL_OK")
</pallas_src>

<mosaic_0001>
module attributes {stable_mosaic.version = 11 : i64} {
  func.func @kernel(%arg0: i32, %arg1: i32, %arg2: memref<1x8x18x8xbf16, #tpu.memory_space<vmem>>, %arg3: memref<1x8x18x8xbf16, #tpu.memory_space<vmem>>, %arg4: memref<1x8x18x8xbf16, #tpu.memory_space<vmem>>, %arg5: memref<72x128xbf16, #tpu.memory_space<vmem>>, %arg6: memref<1x128xf32, #tpu.memory_space<vmem>>, %arg7: memref<1x8x16x128xf32, #tpu.memory_space<vmem>>, %arg8: memref<128x72xbf16, #tpu.memory_space<vmem>>) attributes {dimension_semantics = [#tpu.dimension_semantics<parallel>, #tpu.dimension_semantics<parallel>], iteration_bounds = array<i64: 2, 2>, scalar_prefetch = 0 : i64, scratch_operands = 1 : i64, tpu.core_type = #tpu.core_type<tc>, window_params = [{transform_indices = @transform_0, window_bounds = array<i64: 1, 8, 18, 8>}, {transform_indices = @transform_1, window_bounds = array<i64: 1, 8, 18, 8>}, {transform_indices = @transform_2, window_bounds = array<i64: 1, 8, 18, 8>}, {pipeline_mode = #tpu.pipeline_mode<synchronous>, transform_indices = @transform_3, window_bounds = array<i64: 72, 128>}, {pipeline_mode = #tpu.pipeline_mode<synchronous>, transform_indices = @transform_4, window_bounds = array<i64: 1, 128>}, {transform_indices = @transform_5, window_bounds = array<i64: 1, 8, 16, 128>}]} {
    %c0 = arith.constant 0 : index
    %c0_0 = arith.constant 0 : index
    %c0_1 = arith.constant 0 : index
    %c0_2 = arith.constant 0 : index
    %0 = vector.load %arg2[%c0, %c0_0, %c0_1, %c0_2] : memref<1x8x18x8xbf16, #tpu.memory_space<vmem>>, vector<1x8x18x8xbf16>
    %1 = vector.shape_cast %0 : vector<1x8x18x8xbf16> to vector<8x18x8xbf16>
    %2 = vector.extract_strided_slice %1 {offsets = [0, 0, 0], sizes = [8, 16, 8], strides = [1, 1, 1]} : vector<8x18x8xbf16> to vector<8x16x8xbf16>
    %3 = vector.shape_cast %2 : vector<8x16x8xbf16> to vector<128x8xbf16>
    %c0_3 = arith.constant 0 : index
    %c0_4 = arith.constant 0 : index
    %4 = vector.load %arg8[%c0_3, %c0_4] : memref<128x72xbf16, #tpu.memory_space<vmem>>, vector<128x8xbf16>
    tpu.vector_store %arg8[%c0_3, %c0_4], %3 {strides = array<i32>} : memref<128x72xbf16, #tpu.memory_space<vmem>>, vector<128x8xbf16>,
    %5 = vector.extract_strided_slice %1 {offsets = [0, 1, 0], sizes = [8, 16, 8], strides = [1, 1, 1]} : vector<8x18x8xbf16> to vector<8x16x8xbf16>
    %6 = vector.shape_cast %5 : vector<8x16x8xbf16> to vector<128x8xbf16>
    %c0_5 = arith.constant 0 : index
    %c8 = arith.constant 8 : index
    %7 = vector.load %arg8[%c0_5, %c8] : memref<128x72xbf16, #tpu.memory_space<vmem>>, vector<128x8xbf16>
    tpu.vector_store %arg8[%c0_5, %c8], %6 {strides = array<i32>} : memref<128x72xbf16, #tpu.memory_space<vmem>>, vector<128x8xbf16>,
    %8 = vector.extract_strided_slice %1 {offsets = [0, 2, 0], sizes = [8, 16, 8], strides = [1, 1, 1]} : vector<8x18x8xbf16> to vector<8x16x8xbf16>
    %9 = vector.shape_cast %8 : vector<8x16x8xbf16> to vector<128x8xbf16>
    %c0_6 = arith.constant 0 : index
    %c16 = arith.constant 16 : index
    %10 = vector.load %arg8[%c0_6, %c16] : memref<128x72xbf16, #tpu.memory_space<vmem>>, vector<128x8xbf16>
    tpu.vector_store %arg8[%c0_6, %c16], %9 {strides = array<i32>} : memref<128x72xbf16, #tpu.memory_space<vmem>>, vector<128x8xbf16>,
    %c0_7 = arith.constant 0 : index
    %c0_8 = arith.constant 0 : index
    %c0_9 = arith.constant 0 : index
    %c0_10 = arith.constant 0 : index
    %11 = vector.load %arg3[%c0_7, %c0_8, %c0_9, %c0_10] : memref<1x8x18x8xbf16, #tpu.memory_space<vmem>>, vector<1x8x18x8xbf16>
    %12 = vector.shape_cast %11 : vector<1x8x18x8xbf16> to vector<8x18x8xbf16>
    %13 = vector.extract_strided_slice %12 {offsets = [0, 0, 0], sizes = [8, 16, 8], strides = [1, 1, 1]} : vector<8x18x8xbf16> to vector<8x16x8xbf16>
    %14 = vector.shape_cast %13 : vector<8x16x8xbf16> to vector<128x8xbf16>
    %c0_11 = arith.constant 0 : index
    %c24 = arith.constant 24 : index
    %15 = vector.load %arg8[%c0_11, %c24] : memref<128x72xbf16, #tpu.memory_space<vmem>>, vector<128x8xbf16>
    tpu.vector_store %arg8[%c0_11, %c24], %14 {strides = array<i32>} : memref<128x72xbf16, #tpu.memory_space<vmem>>, vector<128x8xbf16>,
    %16 = vector.extract_strided_slice %12 {offsets = [0, 1, 0], sizes = [8, 16, 8], strides = [1, 1, 1]} : vector<8x18x8xbf16> to vector<8x16x8xbf16>
    %17 = vector.shape_cast %16 : vector<8x16x8xbf16> to vector<128x8xbf16>
    %c0_12 = arith.constant 0 : index
    %c32 = arith.constant 32 : index
    %18 = vector.load %arg8[%c0_12, %c32] : memref<128x72xbf16, #tpu.memory_space<vmem>>, vector<128x8xbf16>
    tpu.vector_store %arg8[%c0_12, %c32], %17 {strides = array<i32>} : memref<128x72xbf16, #tpu.memory_space<vmem>>, vector<128x8xbf16>,
    %19 = vector.extract_strided_slice %12 {offsets = [0, 2, 0], sizes = [8, 16, 8], strides = [1, 1, 1]} : vector<8x18x8xbf16> to vector<8x16x8xbf16>
    %20 = vector.shape_cast %19 : vector<8x16x8xbf16> to vector<128x8xbf16>
    %c0_13 = arith.constant 0 : index
    %c40 = arith.constant 40 : index
    %21 = vector.load %arg8[%c0_13, %c40] : memref<128x72xbf16, #tpu.memory_space<vmem>>, vector<128x8xbf16>
    tpu.vector_store %arg8[%c0_13, %c40], %20 {strides = array<i32>} : memref<128x72xbf16, #tpu.memory_space<vmem>>, vector<128x8xbf16>,
    %c0_14 = arith.constant 0 : index
    %c0_15 = arith.constant 0 : index
    %c0_16 = arith.constant 0 : index
    %c0_17 = arith.constant 0 : index
    %22 = vector.load %arg4[%c0_14, %c0_15, %c0_16, %c0_17] : memref<1x8x18x8xbf16, #tpu.memory_space<vmem>>, vector<1x8x18x8xbf16>
    %23 = vector.shape_cast %22 : vector<1x8x18x8xbf16> to vector<8x18x8xbf16>
    %24 = vector.extract_strided_slice %23 {offsets = [0, 0, 0], sizes = [8, 16, 8], strides = [1, 1, 1]} : vector<8x18x8xbf16> to vector<8x16x8xbf16>
    %25 = vector.shape_cast %24 : vector<8x16x8xbf16> to vector<128x8xbf16>
    %c0_18 = arith.constant 0 : index
    %c48 = arith.constant 48 : index
    %26 = vector.load %arg8[%c0_18, %c48] : memref<128x72xbf16, #tpu.memory_space<vmem>>, vector<128x8xbf16>
    tpu.vector_store %arg8[%c0_18, %c48], %25 {strides = array<i32>} : memref<128x72xbf16, #tpu.memory_space<vmem>>, vector<128x8xbf16>,
    %27 = vector.extract_strided_slice %23 {offsets = [0, 1, 0], sizes = [8, 16, 8], strides = [1, 1, 1]} : vector<8x18x8xbf16> to vector<8x16x8xbf16>
    %28 = vector.shape_cast %27 : vector<8x16x8xbf16> to vector<128x8xbf16>
    %c0_19 = arith.constant 0 : index
    %c56 = arith.constant 56 : index
    %29 = vector.load %arg8[%c0_19, %c56] : memref<128x72xbf16, #tpu.memory_space<vmem>>, vector<128x8xbf16>
    tpu.vector_store %arg8[%c0_19, %c56], %28 {strides = array<i32>} : memref<128x72xbf16, #tpu.memory_space<vmem>>, vector<128x8xbf16>,
    %30 = vector.extract_strided_slice %23 {offsets = [0, 2, 0], sizes = [8, 16, 8], strides = [1, 1, 1]} : vector<8x18x8xbf16> to vector<8x16x8xbf16>
    %31 = vector.shape_cast %30 : vector<8x16x8xbf16> to vector<128x8xbf16>
    %c0_20 = arith.constant 0 : index
    %c64 = arith.constant 64 : index
    %32 = vector.load %arg8[%c0_20, %c64] : memref<128x72xbf16, #tpu.memory_space<vmem>>, vector<128x8xbf16>
    tpu.vector_store %arg8[%c0_20, %c64], %31 {strides = array<i32>} : memref<128x72xbf16, #tpu.memory_space<vmem>>, vector<128x8xbf16>,
    %c0_21 = arith.constant 0 : index
    %c0_22 = arith.constant 0 : index
    %33 = vector.load %arg8[%c0_21, %c0_22] : memref<128x72xbf16, #tpu.memory_space<vmem>>, vector<128x72xbf16>
    %c0_23 = arith.constant 0 : index
    %c0_24 = arith.constant 0 : index
    %34 = vector.load %arg5[%c0_23, %c0_24] : memref<72x128xbf16, #tpu.memory_space<vmem>>, vector<72x128xbf16>
    %cst = arith.constant dense<0.000000e+00> : vector<128x128xf32>
    %35 = tpu.matmul %33, %34, %cst {dimension_numbers = #tpu.dot_dimension_numbers<[1], [0], [0], [1], [0, 0, 1, 1], [], []>} : vector<128x72xbf16>, vector<72x128xbf16>, vector<128x128xf32> -> vector<128x128xf32>
    %c0_25 = arith.constant 0 : index
    %c0_26 = arith.constant 0 : index
    %36 = vector.load %arg6[%c0_25, %c0_26] : memref<1x128xf32, #tpu.memory_space<vmem>>, vector<1x128xf32>
    %37 = vector.broadcast %36 : vector<1x128xf32> to vector<128x128xf32>
    %38 = arith.addf %35, %37 : vector<128x128xf32>
    %cst_27 = arith.constant 0.000000e+00 : f32
    %39 = vector.broadcast %cst_27 : f32 to vector<128x128xf32>
    %40 = arith.maximumf %38, %39 : vector<128x128xf32>
    %41 = vector.shape_cast %40 : vector<128x128xf32> to vector<8x16x128xf32>
    %c0_28 = arith.constant 0 : index
    %c0_29 = arith.constant 0 : index
    %c0_30 = arith.constant 0 : index
    %c0_31 = arith.constant 0 : index
    %42 = vector.load %arg7[%c0_28, %c0_29, %c0_30, %c0_31] : memref<1x8x16x128xf32, #tpu.memory_space<vmem>>, vector<1x8x16x128xf32>
    %43 = vector.shape_cast %42 : vector<1x8x16x128xf32> to vector<8x16x128xf32>
    %44 = vector.shape_cast %41 : vector<8x16x128xf32> to vector<1x8x16x128xf32>
    tpu.vector_store %arg7[%c0_28, %c0_29, %c0_30, %c0_31], %44 {strides = array<i32>} : memref<1x8x16x128xf32, #tpu.memory_space<vmem>>, vector<1x8x16x128xf32>,
    return
  }
  func.func @transform_0(%arg0: i32, %arg1: i32) -> (i32, i32, i32, i32) {
    %c0_i32 = arith.constant 0 : i32
    %c0_i32_0 = arith.constant 0 : i32
    %c0_i32_1 = arith.constant 0 : i32
    return %arg0, %arg1, %c0_i32, %c0_i32_0 : i32, i32, i32, i32
  }
  func.func @transform_1(%arg0: i32, %arg1: i32) -> (i32, i32, i32, i32) {
    %c0_i32 = arith.constant 0 : i32
    %c0_i32_0 = arith.constant 0 : i32
    %c0_i32_1 = arith.constant 0 : i32
    return %arg0, %arg1, %c0_i32, %c0_i32_0 : i32, i32, i32, i32
  }
  func.func @transform_2(%arg0: i32, %arg1: i32) -> (i32, i32, i32, i32) {
    %c0_i32 = arith.constant 0 : i32
    %c0_i32_0 = arith.constant 0 : i32
    %c0_i32_1 = arith.constant 0 : i32
    return %arg0, %arg1, %c0_i32, %c0_i32_0 : i32, i32, i32, i32
  }
  func.func @transform_3(%arg0: i32, %arg1: i32) -> (i32, i32) {
    %c0_i32 = arith.constant 0 : i32
    %c0_i32_0 = arith.constant 0 : i32
    %c0_i32_1 = arith.constant 0 : i32
    return %c0_i32, %c0_i32_0 : i32, i32
  }
  func.func @transform_4(%arg0: i32, %arg1: i32) -> (i32, i32) {
    %c0_i32 = arith.constant 0 : i32
    %c0_i32_0 = arith.constant 0 : i32
    %c0_i32_1 = arith.constant 0 : i32
    return %c0_i32, %c0_i32_0 : i32, i32
  }
  func.func @transform_5(%arg0: i32, %arg1: i32) -> (i32, i32, i32, i32) {
    %c0_i32 = arith.constant 0 : i32
    %c0_i32_0 = arith.constant 0 : i32
    %c0_i32_1 = arith.constant 0 : i32
    return %arg0, %arg1, %c0_i32, %c0_i32_0 : i32, i32, i32, i32
  }
}

</mosaic_0001>

<llo_original>
// kernel: conv_relu.1
$region0: #{conv_relu.1}
  #allocation0 [shape = 'u32[]', space=smem, size = 0x4, offset = 0x4, fixed_abs, tag = 'smem constant byte address 0x4 - core index']
  #allocation1 [shape = 'u32[144,128]{1,0:T(1,128)}', space=vmem, size = 0x12000, scoped, tag = 'internal scratch']
  #allocation2 [shape = 'bf16[128,72]{1,0:T(8,128)(2,1)}', space=vmem, size = 0x8000, scoped, tag = 'scratch operand']
  %s0 = inlined_call_operand.vmem [shape: bf16[2,16,18,8], index: 0, kind: input, shape index: {}]
  %s1 = inlined_call_operand.vmem [shape: bf16[2,16,18,8], index: 1, kind: input, shape index: {}]
  %s2 = inlined_call_operand.vmem [shape: bf16[2,16,18,8], index: 2, kind: input, shape index: {}]
  %s3 = inlined_call_operand.vmem [shape: bf16[72,128], index: 3, kind: input, shape index: {}]
  %s4 = inlined_call_operand.vmem [shape: f32[1,128], index: 4, kind: input, shape index: {}]
  %s5 = inlined_call_operand.vmem [shape: f32[2,16,16,128], index: 5, kind: output, shape index: {}]
  %s6 = sld [smem:[#allocation0]]
  $region53: #{conv_relu.1} parent=0
    _
  %s8 = ssub.s32 1, %s6
  %s9 = scalar_select 0, %s8, %s6
  loop: start=0, step=1, limit=6
  $region2: #{conv_relu.1} parent=0 // loop_pre_header
    _
  $region3: #{conv_relu.1} parent=0 // loop_header
    %s11 = sphi 0, %s15
    %p12 = scmp.ge.s32.totalorder %s11, 6
    %s18 = sphi 0, %s30
    %s19 = sphi 0, %s26
    %s20 = sphi 0, %s18
    %s21 = sphi 0, %s19
    %s22 = sphi 0, %s20
    %s23 = sphi 0, %s21
    %s35 = sphi 0, %s37
    %s38 = sphi 0, %s35
    %s39 = sphi 0, %s38
    %s55 = sphi 0, %s39
    %s63 = sphi 0, %s65
    %s66 = sphi 0, %s63
    %s67 = sphi 0, %s66
    %s83 = sphi 0, %s67
    %s91 = sphi 0, %s93
    %s94 = sphi 0, %s91
    %s95 = sphi 0, %s94
    %s111 = sphi 0, %s95
    %s115 = sphi 0, %s115
    %s117 = sphi 0, %s115
    %s118 = sphi 0, %s117
    %s132 = sphi 0, %s118
    %s136 = sphi 0, %s136
    %s138 = sphi 0, %s136
    %s139 = sphi 0, %s138
    %s153 = sphi 0, %s139
    %s161 = sphi 0, %s163
    %s164 = sphi 0, %s161
    %s165 = sphi 0, %s164
    %s181 = sphi 0, %s165
  $region4: #{conv_relu.1} parent=0 // loop_header_branch
    %14 = sbr.rel (%p12) target = $region8
  $region5: #{conv_relu.1} parent=0 // loop_body
    %s16 = ssub.s32 %s11, 1
    %s17 = ssub.s32 %s11, 2
    %s24 = sadd.s32 1, %s19
    %p25 = scmp.ge.s32.totalorder %s24, 2
    %s26 = scalar_select %p25, 0, %s24
    %s27 = sadd.s32 1, %s18
    %s28 = scalar_select %p25, %s27, %s18
    %p29 = scmp.ge.s32.totalorder %s28, 2
    %s30 = scalar_select %p29, 0, %s28
    %s31 = ssub.s32 %s18, %s30
    %s32 = ssub.s32 %s19, %s26
    %s33 = sor.u32 %s31, %s32
    %p34 = scmp.eq.s32.totalorder %s33, 0
    %s36 = sadd.s32 %s35, 1
    %s37 = scalar_select %p34, %s35, %s36
    %p40 = pneg %p34
    %p41 = scmp.eq.s32.totalorder %s11, 3
    %p42 = por %p40, %p41
    %p43 = scmp.ne.s32.totalorder %s35, %s38
    %p44 = scmp.eq.s32.totalorder %s11, 0
    %p45 = por %p43, %p44
    %p46 = scmp.ne.s32.totalorder %s35, %s38
    %p47 = scmp.eq.s32.totalorder %s16, 3
    %p48 = por %p46, %p47
    %p49 = scmp.ne.s32.totalorder %s38, %s39
    %p50 = scmp.eq.s32.totalorder %s16, 0
    %p51 = por %p49, %p50
    %p52 = scmp.ne.s32.totalorder %s38, %s39
    %p53 = scmp.eq.s32.totalorder %s17, 3
    %p54 = por %p52, %p53
    %p56 = scmp.ne.s32.totalorder %s39, %s55
    %p57 = scmp.eq.s32.totalorder %s17, 0
    %p58 = por %p56, %p57
    %s59 = ssub.s32 %s18, %s30
    %s60 = ssub.s32 %s19, %s26
    %s61 = sor.u32 %s59, %s60
    %p62 = scmp.eq.s32.totalorder %s61, 0
    %s64 = sadd.s32 %s63, 1
    %s65 = scalar_select %p62, %s63, %s64
    %p68 = pneg %p62
    %p69 = scmp.eq.s32.totalorder %s11, 3
    %p70 = por %p68, %p69
    %p71 = scmp.ne.s32.totalorder %s63, %s66
    %p72 = scmp.eq.s32.totalorder %s11, 0
    %p73 = por %p71, %p72
    %p74 = scmp.ne.s32.totalorder %s63, %s66
    %p75 = scmp.eq.s32.totalorder %s16, 3
    %p76 = por %p74, %p75
    %p77 = scmp.ne.s32.totalorder %s66, %s67
    %p78 = scmp.eq.s32.totalorder %s16, 0
    %p79 = por %p77, %p78
    %p80 = scmp.ne.s32.totalorder %s66, %s67
    %p81 = scmp.eq.s32.totalorder %s17, 3
    %p82 = por %p80, %p81
    %p84 = scmp.ne.s32.totalorder %s67, %s83
    %p85 = scmp.eq.s32.totalorder %s17, 0
    %p86 = por %p84, %p85
    %s87 = ssub.s32 %s18, %s30
    %s88 = ssub.s32 %s19, %s26
    %s89 = sor.u32 %s87, %s88
    %p90 = scmp.eq.s32.totalorder %s89, 0
    %s92 = sadd.s32 %s91, 1
    %s93 = scalar_select %p90, %s91, %s92
    %p96 = pneg %p90
    %p97 = scmp.eq.s32.totalorder %s11, 3
    %p98 = por %p96, %p97
    %p99 = scmp.ne.s32.totalorder %s91, %s94
    %p100 = scmp.eq.s32.totalorder %s11, 0
    %p101 = por %p99, %p100
    %p102 = scmp.ne.s32.totalorder %s91, %s94
    %p103 = scmp.eq.s32.totalorder %s16, 3
    %p104 = por %p102, %p103
    %p105 = scmp.ne.s32.totalorder %s94, %s95
    %p106 = scmp.eq.s32.totalorder %s16, 0
    %p107 = por %p105, %p106
    %p108 = scmp.ne.s32.totalorder %s94, %s95
    %p109 = scmp.eq.s32.totalorder %s17, 3
    %p110 = por %p108, %p109
    %p112 = scmp.ne.s32.totalorder %s95, %s111
    %p113 = scmp.eq.s32.totalorder %s17, 0
    %p114 = por %p112, %p113
    %s116 = sadd.s32 %s115, 1
    %p119 = scmp.eq.s32.totalorder %s11, 3
    %p120 = scmp.ne.s32.totalorder %s115, %s117
    %p121 = scmp.eq.s32.totalorder %s11, 0
    %p122 = por %p120, %p121
    %p123 = scmp.ne.s32.totalorder %s115, %s117
    %p124 = scmp.eq.s32.totalorder %s16, 3
    %p125 = por %p123, %p124
    %p126 = scmp.ne.s32.totalorder %s117, %s118
    %p127 = scmp.eq.s32.totalorder %s16, 0
    %p128 = por %p126, %p127
    %p129 = scmp.ne.s32.totalorder %s117, %s118
    %p130 = scmp.eq.s32.totalorder %s17, 3
    %p131 = por %p129, %p130
    %p133 = scmp.ne.s32.totalorder %s118, %s132
    %p134 = scmp.eq.s32.totalorder %s17, 0
    %p135 = por %p133, %p134
    %s137 = sadd.s32 %s136, 1
    %p140 = scmp.eq.s32.totalorder %s11, 3
    %p141 = scmp.ne.s32.totalorder %s136, %s138
    %p142 = scmp.eq.s32.totalorder %s11, 0
    %p143 = por %p141, %p142
    %p144 = scmp.ne.s32.totalorder %s136, %s138
    %p145 = scmp.eq.s32.totalorder %s16, 3
    %p146 = por %p144, %p145
    %p147 = scmp.ne.s32.totalorder %s138, %s139
    %p148 = scmp.eq.s32.totalorder %s16, 0
    %p149 = por %p147, %p148
    %p150 = scmp.ne.s32.totalorder %s138, %s139
    %p151 = scmp.eq.s32.totalorder %s17, 3
    %p152 = por %p150, %p151
    %p154 = scmp.ne.s32.totalorder %s139, %s153
    %p155 = scmp.eq.s32.totalorder %s17, 0
    %p156 = por %p154, %p155
    %s157 = ssub.s32 %s18, %s30
    %s158 = ssub.s32 %s19, %s26
    %s159 = sor.u32 %s157, %s158
    %p160 = scmp.eq.s32.totalorder %s159, 0
    %s162 = sadd.s32 %s161, 1
    %s163 = scalar_select %p160, %s161, %s162
    %p166 = pneg %p160
    %p167 = scmp.eq.s32.totalorder %s11, 3
    %p168 = por %p166, %p167
    %p169 = scmp.ne.s32.totalorder %s161, %s164
    %p170 = scmp.eq.s32.totalorder %s11, 0
    %p171 = por %p169, %p170
    %p172 = scmp.ne.s32.totalorder %s161, %s164
    %p173 = scmp.eq.s32.totalorder %s16, 3
    %p174 = por %p172, %p173
    %p175 = scmp.ne.s32.totalorder %s164, %s165
    %p176 = scmp.eq.s32.totalorder %s16, 0
    %p177 = por %p175, %p176
    %p178 = scmp.ne.s32.totalorder %s164, %s165
    %p179 = scmp.eq.s32.totalorder %s17, 3
    %p180 = por %p178, %p179
    %p182 = scmp.ne.s32.totalorder %s165, %s181
    %p183 = scmp.eq.s32.totalorder %s17, 0
    %p184 = por %p182, %p183
    %p185 = scmp.le.s32.totalorder 1, %s11
    %p186 = scmp.lt.s32.totalorder %s11, 5
    %p187 = pnand %p185, %p186
    %p188 = pneg %p187
    // Predicated region
    $region9: #{conv_relu.1} parent=5 // pred_check
      _
    $region10: #{conv_relu.1} parent=5 // pred_check_branch
      %190 = sbr.rel (%p187) target = $region12
    $region11: #{conv_relu.1} parent=5 // pred_region
      %s191 = ssub.s32 %s11, 1
      // Predicated region
      $region13: #{conv_relu.1} parent=11 // pred_check
        %p192 = pneg %p128
      $region14: #{conv_relu.1} parent=11 // pred_check_branch
        %194 = sbr.rel (%p192) target = $region16
      $region15: #{conv_relu.1} parent=11 // pred_region
        _
      $region16: #{conv_relu.1} parent=11 // pred_fallthru
        _
      // Predicated region
      $region17: #{conv_relu.1} parent=11 // pred_check
        %p195 = pneg %p149
      $region18: #{conv_relu.1} parent=11 // pred_check_branch
        %197 = sbr.rel (%p195) target = $region20
      $region19: #{conv_relu.1} parent=11 // pred_region
        _
      $region20: #{conv_relu.1} parent=11 // pred_fallthru
        _
    $region12: #{conv_relu.1} parent=5 // pred_fallthru
      _
    %p198 = scmp.lt.s32.totalorder %s11, 4
    // Predicated region
    $region21: #{conv_relu.1} parent=5 // pred_check
      %p199 = pneg %p198
    $region22: #{conv_relu.1} parent=5 // pred_check_branch
      %201 = sbr.rel (%p199) target = $region24
    $region23: #{conv_relu.1} parent=5 // pred_region
      // Predicated region
      $region25: #{conv_relu.1} parent=23 // pred_check
        %p202 = pneg %p45
      $region26: #{conv_relu.1} parent=23 // pred_check_branch
        %204 = sbr.rel (%p202) target = $region28
      $region27: #{conv_relu.1} parent=23 // pred_region
        %s205 = smul.u32 8, %s19
        %p206 = scmp.lt.s32.totalorder %s18, 1
        %s207 = scalar_select %p206, %s18, 1
        %p208 = scmp.lt.s32.totalorder %s205, 15
        %s209 = scalar_select %p208, %s205, 15
        %s210 = smul.addr %s209, 3
        %s211 = smul.addr %s207, 48
        %s212 = sadd.s32 %s210, %s211
        %s213 = smul.addr %s212, 4
        %s214 = scalar_lea.vmem %s0, %s213
        %s215 = smul.u32 8, %s19
      $region28: #{conv_relu.1} parent=23 // pred_fallthru
        _
      // Predicated region
      $region29: #{conv_relu.1} parent=23 // pred_check
        %p216 = pneg %p73
      $region30: #{conv_relu.1} parent=23 // pred_check_branch
        %218 = sbr.rel (%p216) target = $region32
      $region31: #{conv_relu.1} parent=23 // pred_region
        %s219 = smul.u32 8, %s19
        %p220 = scmp.lt.s32.totalorder %s18, 1
        %s221 = scalar_select %p220, %s18, 1
        %p222 = scmp.lt.s32.totalorder %s219, 15
        %s223 = scalar_select %p222, %s219, 15
        %s224 = smul.addr %s223, 3
        %s225 = smul.addr %s221, 48
        %s226 = sadd.s32 %s224, %s225
        %s227 = smul.addr %s226, 4
        %s228 = scalar_lea.vmem %s1, %s227
        %s229 = smul.u32 8, %s19
      $region32: #{conv_relu.1} parent=23 // pred_fallthru
        _
      // Predicated region
      $region33: #{conv_relu.1} parent=23 // pred_check
        %p230 = pneg %p101
      $region34: #{conv_relu.1} parent=23 // pred_check_branch
        %232 = sbr.rel (%p230) target = $region36
      $region35: #{conv_relu.1} parent=23 // pred_region
        %s233 = smul.u32 8, %s19
        %p234 = scmp.lt.s32.totalorder %s18, 1
        %s235 = scalar_select %p234, %s18, 1
        %p236 = scmp.lt.s32.totalorder %s233, 15
        %s237 = scalar_select %p236, %s233, 15
        %s238 = smul.addr %s237, 3
        %s239 = smul.addr %s235, 48
        %s240 = sadd.s32 %s238, %s239
        %s241 = smul.addr %s240, 4
        %s242 = scalar_lea.vmem %s2, %s241
        %s243 = smul.u32 8, %s19
      $region36: #{conv_relu.1} parent=23 // pred_fallthru
        _
    $region24: #{conv_relu.1} parent=5 // pred_fallthru
      _
    %p244 = scmp.le.s32.totalorder 1, %s11
    %p245 = scmp.lt.s32.totalorder %s11, 5
    %p246 = pnand %p244, %p245
    %p247 = pneg %p246
    // Predicated region
    $region37: #{conv_relu.1} parent=5 // pred_check
      _
    $region38: #{conv_relu.1} parent=5 // pred_check_branch
      %249 = sbr.rel (%p246) target = $region40
    $region39: #{conv_relu.1} parent=5 // pred_region
      %s250 = ssub.s32 %s11, 1
      %s251 = smul.u32 8, %s21
      %p252 = scmp.lt.s32.totalorder %s20, 1
      %s253 = scalar_select %p252, %s20, 1
      %p254 = scmp.lt.s32.totalorder %s251, 15
      %s255 = scalar_select %p254, %s251, 15
      %s256 = smul.addr %s255, 3
      %s257 = smul.addr %s253, 48
      %s258 = sadd.s32 %s256, %s257
      %s259 = smul.addr %s258, 4
      %s260 = scalar_lea.vmem %s0, %s259
      %p261 = pneg %p51
      %p262 = pneg %p48
      %s263 = smul.u32 8, %s21
      %p264 = scmp.lt.s32.totalorder %s20, 1
      %s265 = scalar_select %p264, %s20, 1
      %p266 = scmp.lt.s32.totalorder %s263, 15
      %s267 = scalar_select %p266, %s263, 15
      %s268 = smul.addr %s267, 3
      %s269 = smul.addr %s265, 48
      %s270 = sadd.s32 %s268, %s269
      %s271 = smul.addr %s270, 4
      %s272 = scalar_lea.vmem %s1, %s271
      %p273 = pneg %p79
      %p274 = pneg %p76
      %s275 = smul.u32 8, %s21
      %p276 = scmp.lt.s32.totalorder %s20, 1
      %s277 = scalar_select %p276, %s20, 1
      %p278 = scmp.lt.s32.totalorder %s275, 15
      %s279 = scalar_select %p278, %s275, 15
      %s280 = smul.addr %s279, 3
      %s281 = smul.addr %s277, 48
      %s282 = sadd.s32 %s280, %s281
      %s283 = smul.addr %s282, 4
      %s284 = scalar_lea.vmem %s2, %s283
      %p285 = pneg %p107
      %p286 = pneg %p104
      %p287 = pneg %p128
      %p288 = pneg %p125
      %p289 = pneg %p149
      %p290 = pneg %p146
      %p291 = pneg %p177
      %p292 = pneg %p174
      %s293 = smul.u32 8, %s21
      %p294 = scmp.lt.s32.totalorder %s20, 1
      %s295 = scalar_select %p294, %s20, 1
      %p296 = scmp.lt.s32.totalorder %s293, 15
      %s297 = scalar_select %p296, %s293, 15
      %s298 = smul.addr %s297, 2
      %s299 = smul.addr %s295, 32
      %s300 = sadd.s32 %s298, %s299
      %s301 = smul.addr %s300, 8
      %s302 = scalar_lea.vmem %s5, %s301
      %s303 = smul.u32 8, %s21
      %p304 = scmp.lt.s32.totalorder %s20, 1
      %s305 = scalar_select %p304, %s20, 1
      %p306 = scmp.lt.s32.totalorder %s303, 15
      %s307 = scalar_select %p306, %s303, 15
      %s308 = smul.addr %s307, 3
      %s309 = smul.addr %s305, 48
      %s310 = sadd.s32 %s308, %s309
      %s311 = smul.addr %s310, 4
      %s312 = scalar_lea.vmem %s0, %s311
      %s313 = smul.u32 8, %s21
      %s314 = smul.u32 8, %s21
      %p315 = scmp.lt.s32.totalorder %s20, 1
      %s316 = scalar_select %p315, %s20, 1
      %p317 = scmp.lt.s32.totalorder %s314, 15
      %s318 = scalar_select %p317, %s314, 15
      %s319 = smul.addr %s318, 3
      %s320 = smul.addr %s316, 48
      %s321 = sadd.s32 %s319, %s320
      %s322 = smul.addr %s321, 4
      %s323 = scalar_lea.vmem %s1, %s322
      %s324 = smul.u32 8, %s21
      %s325 = smul.u32 8, %s21
      %p326 = scmp.lt.s32.totalorder %s20, 1
      %s327 = scalar_select %p326, %s20, 1
      %p328 = scmp.lt.s32.totalorder %s325, 15
      %s329 = scalar_select %p328, %s325, 15
      %s330 = smul.addr %s329, 3
      %s331 = smul.addr %s327, 48
      %s332 = sadd.s32 %s330, %s331
      %s333 = smul.addr %s332, 4
      %s334 = scalar_lea.vmem %s2, %s333
      %s335 = smul.u32 8, %s21
      %s336 = smul.u32 8, %s21
      %p337 = scmp.lt.s32.totalorder %s20, 1
      %s338 = scalar_select %p337, %s20, 1
      %p339 = scmp.lt.s32.totalorder %s336, 15
      %s340 = scalar_select %p339, %s336, 15
      %s341 = smul.addr %s340, 2
      %s342 = smul.addr %s338, 32
      %s343 = sadd.s32 %s341, %s342
      %s344 = smul.addr %s343, 8
      %s345 = scalar_lea.vmem %s5, %s344
      %s346 = smul.u32 8, %s21
      %v348 = vld [vmem:[%s312] sm:$0xf]
      %v349 = vld [vmem:[%s312 + $0x4] sm:$0xf]
      %v350 = vld [vmem:[%s312 + $0x8] sm:$0x1]
      %v351 = vld [vmem:[%s312 + $0xc] sm:$0xf]
      %v352 = vld [vmem:[%s312 + $0x10] sm:$0xf]
      %v353 = vld [vmem:[%s312 + $0x14] sm:$0x1]
      %v354 = vld [vmem:[%s312 + $0x18] sm:$0xf]
      %v355 = vld [vmem:[%s312 + $0x1c] sm:$0xf]
      %v356 = vld [vmem:[%s312 + $0x20] sm:$0x1]
      %v357 = vld [vmem:[%s312 + $0x24] sm:$0xf]
      %v358 = vld [vmem:[%s312 + $0x28] sm:$0xf]
      %v359 = vld [vmem:[%s312 + $0x2c] sm:$0x1]
      %v360 = vld [vmem:[%s312 + $0x30] sm:$0xf]
      %v361 = vld [vmem:[%s312 + $0x34] sm:$0xf]
      %v362 = vld [vmem:[%s312 + $0x38] sm:$0x1]
      %v363 = vld [vmem:[%s312 + $0x3c] sm:$0xf]
      %v364 = vld [vmem:[%s312 + $0x40] sm:$0xf]
      %v365 = vld [vmem:[%s312 + $0x44] sm:$0x1]
      %v366 = vld [vmem:[%s312 + $0x48] sm:$0xf]
      %v367 = vld [vmem:[%s312 + $0x4c] sm:$0xf]
      %v368 = vld [vmem:[%s312 + $0x50] sm:$0x1]
      %v369 = vld [vmem:[%s312 + $0x54] sm:$0xf]
      %v370 = vld [vmem:[%s312 + $0x58] sm:$0xf]
      %v371 = vld [vmem:[%s312 + $0x5c] sm:$0x1]
      %vm372 = vcmask 60416
      %373 = vst.msk [vmem:[#allocation2] sm:$0xf] %vm372, %v348
      %374 = vst.msk [vmem:[#allocation2 + $0x4] sm:$0xf] %vm372, %v349
      %375 = vst.msk [vmem:[#allocation2 + $0x8] sm:$0xf] %vm372, %v351
      %376 = vst.msk [vmem:[#allocation2 + $0xc] sm:$0xf] %vm372, %v352
      %377 = vst.msk [vmem:[#allocation2 + $0x10] sm:$0xf] %vm372, %v354
      %378 = vst.msk [vmem:[#allocation2 + $0x14] sm:$0xf] %vm372, %v355
      %379 = vst.msk [vmem:[#allocation2 + $0x18] sm:$0xf] %vm372, %v357
      %380 = vst.msk [vmem:[#allocation2 + $0x1c] sm:$0xf] %vm372, %v358
      %381 = vst.msk [vmem:[#allocation2 + $0x20] sm:$0xf] %vm372, %v360
      %382 = vst.msk [vmem:[#allocation2 + $0x24] sm:$0xf] %vm372, %v361
      %383 = vst.msk [vmem:[#allocation2 + $0x28] sm:$0xf] %vm372, %v363
      %384 = vst.msk [vmem:[#allocation2 + $0x2c] sm:$0xf] %vm372, %v364
      %385 = vst.msk [vmem:[#allocation2 + $0x30] sm:$0xf] %vm372, %v366
      %386 = vst.msk [vmem:[#allocation2 + $0x34] sm:$0xf] %vm372, %v367
      %387 = vst.msk [vmem:[#allocation2 + $0x38] sm:$0xf] %vm372, %v369
      %388 = vst.msk [vmem:[#allocation2 + $0x3c] sm:$0xf] %vm372, %v370
      %vm389 = vsmask.f32 3328
      %vm390 = vsmask.f32 7440
      %vm391 = vmor %vm389, %vm390
      %v393 = vshrl.u32 %v348, 16
      %v395 = vrot.slane %v393, 4
      %v396 = vshll.u32 %v348, 16
      %v398 = vrot.slane %v396, 5
      %v399 = vor.u32 %v395, %v398
      %v400 = vrot.slane %v399, 4
      %v402 = vshll.u32 %v349, 16
      %v404 = vrot.slane %v402, 5
      %v405 = vsel %vm391, %v400, %v404
      %v406 = vshrl.u32 %v349, 16
      %v408 = vrot.slane %v406, 4
      %v409 = vor.u32 %v408, %v404
      %v410 = vrot.slane %v409, 4
      %v412 = vshll.u32 %v350, 16
      %v414 = vrot.slane %v412, 5
      %v415 = vsel %vm391, %v410, %v414
      %v417 = vshrl.u32 %v351, 16
      %v419 = vrot.slane %v417, 4
      %v420 = vshll.u32 %v351, 16
      %v422 = vrot.slane %v420, 5
      %v423 = vor.u32 %v419, %v422
      %v424 = vrot.slane %v423, 4
      %v426 = vshll.u32 %v352, 16
      %v428 = vrot.slane %v426, 5
      %v429 = vsel %vm391, %v424, %v428
      %v430 = vshrl.u32 %v352, 16
      %v432 = vrot.slane %v430, 4
      %v433 = vor.u32 %v432, %v428
      %v434 = vrot.slane %v433, 4
      %v436 = vshll.u32 %v353, 16
      %v438 = vrot.slane %v436, 5
      %v439 = vsel %vm391, %v434, %v438
      %v441 = vshrl.u32 %v354, 16
      %v443 = vrot.slane %v441, 4
      %v444 = vshll.u32 %v354, 16
      %v446 = vrot.slane %v444, 5
      %v447 = vor.u32 %v443, %v446
      %v448 = vrot.slane %v447, 4
      %v450 = vshll.u32 %v355, 16
      %v452 = vrot.slane %v450, 5
      %v453 = vsel %vm391, %v448, %v452
      %v454 = vshrl.u32 %v355, 16
      %v456 = vrot.slane %v454, 4
      %v457 = vor.u32 %v456, %v452
      %v458 = vrot.slane %v457, 4
      %v460 = vshll.u32 %v356, 16
      %v462 = vrot.slane %v460, 5
      %v463 = vsel %vm391, %v458, %v462
      %v465 = vshrl.u32 %v357, 16
      %v467 = vrot.slane %v465, 4
      %v468 = vshll.u32 %v357, 16
      %v470 = vrot.slane %v468, 5
      %v471 = vor.u32 %v467, %v470
      %v472 = vrot.slane %v471, 4
      %v474 = vshll.u32 %v358, 16
      %v476 = vrot.slane %v474, 5
      %v477 = vsel %vm391, %v472, %v476
      %v478 = vshrl.u32 %v358, 16
      %v480 = vrot.slane %v478, 4
      %v481 = vor.u32 %v480, %v476
      %v482 = vrot.slane %v481, 4
      %v484 = vshll.u32 %v359, 16
      %v486 = vrot.slane %v484, 5
      %v487 = vsel %vm391, %v482, %v486
      %v489 = vshrl.u32 %v360, 16
      %v491 = vrot.slane %v489, 4
      %v492 = vshll.u32 %v360, 16
      %v494 = vrot.slane %v492, 5
      %v495 = vor.u32 %v491, %v494
      %v496 = vrot.slane %v495, 4
      %v498 = vshll.u32 %v361, 16
      %v500 = vrot.slane %v498, 5
      %v501 = vsel %vm391, %v496, %v500
      %v502 = vshrl.u32 %v361, 16
      %v504 = vrot.slane %v502, 4
      %v505 = vor.u32 %v504, %v500
      %v506 = vrot.slane %v505, 4
      %v508 = vshll.u32 %v362, 16
      %v510 = vrot.slane %v508, 5
      %v511 = vsel %vm391, %v506, %v510
      %v513 = vshrl.u32 %v363, 16
      %v515 = vrot.slane %v513, 4
      %v516 = vshll.u32 %v363, 16
      %v518 = vrot.slane %v516, 5
      %v519 = vor.u32 %v515, %v518
      %v520 = vrot.slane %v519, 4
      %v522 = vshll.u32 %v364, 16
      %v524 = vrot.slane %v522, 5
      %v525 = vsel %vm391, %v520, %v524
      %v526 = vshrl.u32 %v364, 16
      %v528 = vrot.slane %v526, 4
      %v529 = vor.u32 %v528, %v524
      %v530 = vrot.slane %v529, 4
      %v532 = vshll.u32 %v365, 16
      %v534 = vrot.slane %v532, 5
      %v535 = vsel %vm391, %v530, %v534
      %v537 = vshrl.u32 %v366, 16
      %v539 = vrot.slane %v537, 4
      %v540 = vshll.u32 %v366, 16
      %v542 = vrot.slane %v540, 5
      %v543 = vor.u32 %v539, %v542
      %v544 = vrot.slane %v543, 4
      %v546 = vshll.u32 %v367, 16
      %v548 = vrot.slane %v546, 5
      %v549 = vsel %vm391, %v544, %v548
      %v550 = vshrl.u32 %v367, 16
      %v552 = vrot.slane %v550, 4
      %v553 = vor.u32 %v552, %v548
      %v554 = vrot.slane %v553, 4
      %v556 = vshll.u32 %v368, 16
      %v558 = vrot.slane %v556, 5
      %v559 = vsel %vm391, %v554, %v558
      %v561 = vshrl.u32 %v369, 16
      %v563 = vrot.slane %v561, 4
      %v564 = vshll.u32 %v369, 16
      %v566 = vrot.slane %v564, 5
      %v567 = vor.u32 %v563, %v566
      %v568 = vrot.slane %v567, 4
      %v570 = vshll.u32 %v370, 16
      %v572 = vrot.slane %v570, 5
      %v573 = vsel %vm391, %v568, %v572
      %v574 = vshrl.u32 %v370, 16
      %v576 = vrot.slane %v574, 4
      %v577 = vor.u32 %v576, %v572
      %v578 = vrot.slane %v577, 4
      %v580 = vshll.u32 %v371, 16
      %v582 = vrot.slane %v580, 5
      %v583 = vsel %vm391, %v578, %v582
      %584 = vrot.lane.b32.xlu0 %v405, 8
      %v585 = vpop.permute.xlu0 %584
      %586 = vrot.lane.b32.xlu0 %v415, 8
      %v587 = vpop.permute.xlu0 %586
      %588 = vrot.lane.b32.xlu0 %v429, 8
      %v589 = vpop.permute.xlu0 %588
      %590 = vrot.lane.b32.xlu0 %v439, 8
      %v591 = vpop.permute.xlu0 %590
      %592 = vrot.lane.b32.xlu0 %v453, 8
      %v593 = vpop.permute.xlu0 %592
      %594 = vrot.lane.b32.xlu0 %v463, 8
      %v595 = vpop.permute.xlu0 %594
      %596 = vrot.lane.b32.xlu0 %v477, 8
      %v597 = vpop.permute.xlu0 %596
      %598 = vrot.lane.b32.xlu0 %v487, 8
      %v599 = vpop.permute.xlu0 %598
      %600 = vrot.lane.b32.xlu0 %v501, 8
      %v601 = vpop.permute.xlu0 %600
      %602 = vrot.lane.b32.xlu0 %v511, 8
      %v603 = vpop.permute.xlu0 %602
      %604 = vrot.lane.b32.xlu0 %v525, 8
      %v605 = vpop.permute.xlu0 %604
      %606 = vrot.lane.b32.xlu0 %v535, 8
      %v607 = vpop.permute.xlu0 %606
      %608 = vrot.lane.b32.xlu0 %v549, 8
      %v609 = vpop.permute.xlu0 %608
      %610 = vrot.lane.b32.xlu0 %v559, 8
      %v611 = vpop.permute.xlu0 %610
      %612 = vrot.lane.b32.xlu0 %v573, 8
      %v613 = vpop.permute.xlu0 %612
      %614 = vrot.lane.b32.xlu0 %v583, 8
      %v615 = vpop.permute.xlu0 %614
      %vm632 = vcmask 126016
      %633 = vst.msk [vmem:[#allocation2] sm:$0xf] %vm632, %v585
      %634 = vst.msk [vmem:[#allocation2 + $0x4] sm:$0xf] %vm632, %v587
      %635 = vst.msk [vmem:[#allocation2 + $0x8] sm:$0xf] %vm632, %v589
      %636 = vst.msk [vmem:[#allocation2 + $0xc] sm:$0xf] %vm632, %v591
      %637 = vst.msk [vmem:[#allocation2 + $0x10] sm:$0xf] %vm632, %v593
      %638 = vst.msk [vmem:[#allocation2 + $0x14] sm:$0xf] %vm632, %v595
      %639 = vst.msk [vmem:[#allocation2 + $0x18] sm:$0xf] %vm632, %v597
      %640 = vst.msk [vmem:[#allocation2 + $0x1c] sm:$0xf] %vm632, %v599
      %641 = vst.msk [vmem:[#allocation2 + $0x20] sm:$0xf] %vm632, %v601
      %642 = vst.msk [vmem:[#allocation2 + $0x24] sm:$0xf] %vm632, %v603
      %643 = vst.msk [vmem:[#allocation2 + $0x28] sm:$0xf] %vm632, %v605
      %644 = vst.msk [vmem:[#allocation2 + $0x2c] sm:$0xf] %vm632, %v607
      %645 = vst.msk [vmem:[#allocation2 + $0x30] sm:$0xf] %vm632, %v609
      %646 = vst.msk [vmem:[#allocation2 + $0x34] sm:$0xf] %vm632, %v611
      %647 = vst.msk [vmem:[#allocation2 + $0x38] sm:$0xf] %vm632, %v613
      %648 = vst.msk [vmem:[#allocation2 + $0x3c] sm:$0xf] %vm632, %v615
      %vm673 = vcmask 1042432
      %vm674 = vcmask 1046532
      %vm675 = vmor %vm673, %vm674
      %v676 = vrot.slane %v348, 5
      %v677 = vrot.slane %v676, 4
      %v678 = vrot.slane %v349, 5
      %v679 = vsel %vm675, %v677, %v678
      %v680 = vrot.slane %v678, 4
      %v681 = vrot.slane %v350, 5
      %v682 = vsel %vm675, %v680, %v681
      %v683 = vrot.slane %v351, 5
      %v684 = vrot.slane %v683, 4
      %v685 = vrot.slane %v352, 5
      %v686 = vsel %vm675, %v684, %v685
      %v687 = vrot.slane %v685, 4
      %v688 = vrot.slane %v353, 5
      %v689 = vsel %vm675, %v687, %v688
      %v690 = vrot.slane %v354, 5
      %v691 = vrot.slane %v690, 4
      %v692 = vrot.slane %v355, 5
      %v693 = vsel %vm675, %v691, %v692
      %v694 = vrot.slane %v692, 4
      %v695 = vrot.slane %v356, 5
      %v696 = vsel %vm675, %v694, %v695
      %v697 = vrot.slane %v357, 5
      %v698 = vrot.slane %v697, 4
      %v699 = vrot.slane %v358, 5
      %v700 = vsel %vm675, %v698, %v699
      %v701 = vrot.slane %v699, 4
      %v702 = vrot.slane %v359, 5
      %v703 = vsel %vm675, %v701, %v702
      %v704 = vrot.slane %v360, 5
      %v705 = vrot.slane %v704, 4
      %v706 = vrot.slane %v361, 5
      %v707 = vsel %vm675, %v705, %v706
      %v708 = vrot.slane %v706, 4
      %v709 = vrot.slane %v362, 5
      %v710 = vsel %vm675, %v708, %v709
      %v711 = vrot.slane %v363, 5
      %v712 = vrot.slane %v711, 4
      %v713 = vrot.slane %v364, 5
      %v714 = vsel %vm675, %v712, %v713
      %v715 = vrot.slane %v713, 4
      %v716 = vrot.slane %v365, 5
      %v717 = vsel %vm675, %v715, %v716
      %v718 = vrot.slane %v366, 5
      %v719 = vrot.slane %v718, 4
      %v720 = vrot.slane %v367, 5
      %v721 = vsel %vm675, %v719, %v720
      %v722 = vrot.slane %v720, 4
      %v723 = vrot.slane %v368, 5
      %v724 = vsel %vm675, %v722, %v723
      %v725 = vrot.slane %v369, 5
      %v726 = vrot.slane %v725, 4
      %v727 = vrot.slane %v370, 5
      %v728 = vsel %vm675, %v726, %v727
      %v729 = vrot.slane %v727, 4
      %v730 = vrot.slane %v371, 5
      %v731 = vsel %vm675, %v729, %v730
      %732 = vrot.lane.b32.xlu0 %v679, 16
      %v733 = vpop.permute.xlu0 %732
      %734 = vrot.lane.b32.xlu0 %v682, 16
      %v735 = vpop.permute.xlu0 %734
      %736 = vrot.lane.b32.xlu0 %v686, 16
      %v737 = vpop.permute.xlu0 %736
      %738 = vrot.lane.b32.xlu0 %v689, 16
      %v739 = vpop.permute.xlu0 %738
      %740 = vrot.lane.b32.xlu0 %v693, 16
      %v741 = vpop.permute.xlu0 %740
      %742 = vrot.lane.b32.xlu0 %v696, 16
      %v743 = vpop.permute.xlu0 %742
      %744 = vrot.lane.b32.xlu0 %v700, 16
      %v745 = vpop.permute.xlu0 %744
      %746 = vrot.lane.b32.xlu0 %v703, 16
      %v747 = vpop.permute.xlu0 %746
      %748 = vrot.lane.b32.xlu0 %v707, 16
      %v749 = vpop.permute.xlu0 %748
      %750 = vrot.lane.b32.xlu0 %v710, 16
      %v751 = vpop.permute.xlu0 %750
      %752 = vrot.lane.b32.xlu0 %v714, 16
      %v753 = vpop.permute.xlu0 %752
      %754 = vrot.lane.b32.xlu0 %v717, 16
      %v755 = vpop.permute.xlu0 %754
      %756 = vrot.lane.b32.xlu0 %v721, 16
      %v757 = vpop.permute.xlu0 %756
      %758 = vrot.lane.b32.xlu0 %v724, 16
      %v759 = vpop.permute.xlu0 %758
      %760 = vrot.lane.b32.xlu0 %v728, 16
      %v761 = vpop.permute.xlu0 %760
      %762 = vrot.lane.b32.xlu0 %v731, 16
      %v763 = vpop.permute.xlu0 %762
      %vm780 = vcmask 191616
      %781 = vst.msk [vmem:[#allocation2] sm:$0xf] %vm780, %v733
      %782 = vst.msk [vmem:[#allocation2 + $0x4] sm:$0xf] %vm780, %v735
      %783 = vst.msk [vmem:[#allocation2 + $0x8] sm:$0xf] %vm780, %v737
      %784 = vst.msk [vmem:[#allocation2 + $0xc] sm:$0xf] %vm780, %v739
      %785 = vst.msk [vmem:[#allocation2 + $0x10] sm:$0xf] %vm780, %v741
      %786 = vst.msk [vmem:[#allocation2 + $0x14] sm:$0xf] %vm780, %v743
      %787 = vst.msk [vmem:[#allocation2 + $0x18] sm:$0xf] %vm780, %v745
      %788 = vst.msk [vmem:[#allocation2 + $0x1c] sm:$0xf] %vm780, %v747
      %789 = vst.msk [vmem:[#allocation2 + $0x20] sm:$0xf] %vm780, %v749
      %790 = vst.msk [vmem:[#allocation2 + $0x24] sm:$0xf] %vm780, %v751
      %791 = vst.msk [vmem:[#allocation2 + $0x28] sm:$0xf] %vm780, %v753
      %792 = vst.msk [vmem:[#allocation2 + $0x2c] sm:$0xf] %vm780, %v755
      %793 = vst.msk [vmem:[#allocation2 + $0x30] sm:$0xf] %vm780, %v757
      %794 = vst.msk [vmem:[#allocation2 + $0x34] sm:$0xf] %vm780, %v759
      %795 = vst.msk [vmem:[#allocation2 + $0x38] sm:$0xf] %vm780, %v761
      %796 = vst.msk [vmem:[#allocation2 + $0x3c] sm:$0xf] %vm780, %v763
      %v797 = vld [vmem:[%s323] sm:$0xf]
      %v798 = vld [vmem:[%s323 + $0x4] sm:$0xf]
      %v799 = vld [vmem:[%s323 + $0x8] sm:$0x1]
      %v800 = vld [vmem:[%s323 + $0xc] sm:$0xf]
      %v801 = vld [vmem:[%s323 + $0x10] sm:$0xf]
      %v802 = vld [vmem:[%s323 + $0x14] sm:$0x1]
      %v803 = vld [vmem:[%s323 + $0x18] sm:$0xf]
      %v804 = vld [vmem:[%s323 + $0x1c] sm:$0xf]
      %v805 = vld [vmem:[%s323 + $0x20] sm:$0x1]
      %v806 = vld [vmem:[%s323 + $0x24] sm:$0xf]
      %v807 = vld [vmem:[%s323 + $0x28] sm:$0xf]
      %v808 = vld [vmem:[%s323 + $0x2c] sm:$0x1]
      %v809 = vld [vmem:[%s323 + $0x30] sm:$0xf]
      %v810 = vld [vmem:[%s323 + $0x34] sm:$0xf]
      %v811 = vld [vmem:[%s323 + $0x38] sm:$0x1]
      %v812 = vld [vmem:[%s323 + $0x3c] sm:$0xf]
      %v813 = vld [vmem:[%s323 + $0x40] sm:$0xf]
      %v814 = vld [vmem:[%s323 + $0x44] sm:$0x1]
      %v815 = vld [vmem:[%s323 + $0x48] sm:$0xf]
      %v816 = vld [vmem:[%s323 + $0x4c] sm:$0xf]
      %v817 = vld [vmem:[%s323 + $0x50] sm:$0x1]
      %v818 = vld [vmem:[%s323 + $0x54] sm:$0xf]
      %v819 = vld [vmem:[%s323 + $0x58] sm:$0xf]
      %v820 = vld [vmem:[%s323 + $0x5c] sm:$0x1]
      %837 = vrot.lane.b32.xlu0 %v797, 24
      %v838 = vpop.permute.xlu0 %837
      %839 = vrot.lane.b32.xlu0 %v798, 24
      %v840 = vpop.permute.xlu0 %839
      %841 = vrot.lane.b32.xlu0 %v800, 24
      %v842 = vpop.permute.xlu0 %841
      %843 = vrot.lane.b32.xlu0 %v801, 24
      %v844 = vpop.permute.xlu0 %843
      %845 = vrot.lane.b32.xlu0 %v803, 24
      %v846 = vpop.permute.xlu0 %845
      %847 = vrot.lane.b32.xlu0 %v804, 24
      %v848 = vpop.permute.xlu0 %847
      %849 = vrot.lane.b32.xlu0 %v806, 24
      %v850 = vpop.permute.xlu0 %849
      %851 = vrot.lane.b32.xlu0 %v807, 24
      %v852 = vpop.permute.xlu0 %851
      %853 = vrot.lane.b32.xlu0 %v809, 24
      %v854 = vpop.permute.xlu0 %853
      %855 = vrot.lane.b32.xlu0 %v810, 24
      %v856 = vpop.permute.xlu0 %855
      %857 = vrot.lane.b32.xlu0 %v812, 24
      %v858 = vpop.permute.xlu0 %857
      %859 = vrot.lane.b32.xlu0 %v813, 24
      %v860 = vpop.permute.xlu0 %859
      %861 = vrot.lane.b32.xlu0 %v815, 24
      %v862 = vpop.permute.xlu0 %861
      %863 = vrot.lane.b32.xlu0 %v816, 24
      %v864 = vpop.permute.xlu0 %863
      %865 = vrot.lane.b32.xlu0 %v818, 24
      %v866 = vpop.permute.xlu0 %865
      %867 = vrot.lane.b32.xlu0 %v819, 24
      %v868 = vpop.permute.xlu0 %867
      %vm885 = vcmask 257216
      %886 = vst.msk [vmem:[#allocation2] sm:$0xf] %vm885, %v838
      %887 = vst.msk [vmem:[#allocation2 + $0x4] sm:$0xf] %vm885, %v840
      %888 = vst.msk [vmem:[#allocation2 + $0x8] sm:$0xf] %vm885, %v842
      %889 = vst.msk [vmem:[#allocation2 + $0xc] sm:$0xf] %vm885, %v844
      %890 = vst.msk [vmem:[#allocation2 + $0x10] sm:$0xf] %vm885, %v846
      %891 = vst.msk [vmem:[#allocation2 + $0x14] sm:$0xf] %vm885, %v848
      %892 = vst.msk [vmem:[#allocation2 + $0x18] sm:$0xf] %vm885, %v850
      %893 = vst.msk [vmem:[#allocation2 + $0x1c] sm:$0xf] %vm885, %v852
      %894 = vst.msk [vmem:[#allocation2 + $0x20] sm:$0xf] %vm885, %v854
      %895 = vst.msk [vmem:[#allocation2 + $0x24] sm:$0xf] %vm885, %v856
      %896 = vst.msk [vmem:[#allocation2 + $0x28] sm:$0xf] %vm885, %v858
      %897 = vst.msk [vmem:[#allocation2 + $0x2c] sm:$0xf] %vm885, %v860
      %898 = vst.msk [vmem:[#allocation2 + $0x30] sm:$0xf] %vm885, %v862
      %899 = vst.msk [vmem:[#allocation2 + $0x34] sm:$0xf] %vm885, %v864
      %900 = vst.msk [vmem:[#allocation2 + $0x38] sm:$0xf] %vm885, %v866
      %901 = vst.msk [vmem:[#allocation2 + $0x3c] sm:$0xf] %vm885, %v868
      %v903 = vshrl.u32 %v797, 16
      %v905 = vrot.slane %v903, 4
      %v906 = vshll.u32 %v797, 16
      %v908 = vrot.slane %v906, 5
      %v909 = vor.u32 %v905, %v908
      %v910 = vrot.slane %v909, 4
      %v912 = vshll.u32 %v798, 16
      %v914 = vrot.slane %v912, 5
      %v915 = vsel %vm391, %v910, %v914
      %v916 = vshrl.u32 %v798, 16
      %v918 = vrot.slane %v916, 4
      %v919 = vor.u32 %v918, %v914
      %v920 = vrot.slane %v919, 4
      %v922 = vshll.u32 %v799, 16
      %v924 = vrot.slane %v922, 5
      %v925 = vsel %vm391, %v920, %v924
      %v927 = vshrl.u32 %v800, 16
      %v929 = vrot.slane %v927, 4
      %v930 = vshll.u32 %v800, 16
      %v932 = vrot.slane %v930, 5
      %v933 = vor.u32 %v929, %v932
      %v934 = vrot.slane %v933, 4
      %v936 = vshll.u32 %v801, 16
      %v938 = vrot.slane %v936, 5
      %v939 = vsel %vm391, %v934, %v938
      %v940 = vshrl.u32 %v801, 16
      %v942 = vrot.slane %v940, 4
      %v943 = vor.u32 %v942, %v938
      %v944 = vrot.slane %v943, 4
      %v946 = vshll.u32 %v802, 16
      %v948 = vrot.slane %v946, 5
      %v949 = vsel %vm391, %v944, %v948
      %v951 = vshrl.u32 %v803, 16
      %v953 = vrot.slane %v951, 4
      %v954 = vshll.u32 %v803, 16
      %v956 = vrot.slane %v954, 5
      %v957 = vor.u32 %v953, %v956
      %v958 = vrot.slane %v957, 4
      %v960 = vshll.u32 %v804, 16
      %v962 = vrot.slane %v960, 5
      %v963 = vsel %vm391, %v958, %v962
      %v964 = vshrl.u32 %v804, 16
      %v966 = vrot.slane %v964, 4
      %v967 = vor.u32 %v966, %v962
      %v968 = vrot.slane %v967, 4
      %v970 = vshll.u32 %v805, 16
      %v972 = vrot.slane %v970, 5
      %v973 = vsel %vm391, %v968, %v972
      %v975 = vshrl.u32 %v806, 16
      %v977 = vrot.slane %v975, 4
      %v978 = vshll.u32 %v806, 16
      %v980 = vrot.slane %v978, 5
      %v981 = vor.u32 %v977, %v980
      %v982 = vrot.slane %v981, 4
      %v984 = vshll.u32 %v807, 16
      %v986 = vrot.slane %v984, 5
      %v987 = vsel %vm391, %v982, %v986
      %v988 = vshrl.u32 %v807, 16
      %v990 = vrot.slane %v988, 4
      %v991 = vor.u32 %v990, %v986
      %v992 = vrot.slane %v991, 4
      %v994 = vshll.u32 %v808, 16
      %v996 = vrot.slane %v994, 5
      %v997 = vsel %vm391, %v992, %v996
      %v999 = vshrl.u32 %v809, 16
      %v1001 = vrot.slane %v999, 4
      %v1002 = vshll.u32 %v809, 16
      %v1004 = vrot.slane %v1002, 5
      %v1005 = vor.u32 %v1001, %v1004
      %v1006 = vrot.slane %v1005, 4
      %v1008 = vshll.u32 %v810, 16
      %v1010 = vrot.slane %v1008, 5
      %v1011 = vsel %vm391, %v1006, %v1010
      %v1012 = vshrl.u32 %v810, 16
      %v1014 = vrot.slane %v1012, 4
      %v1015 = vor.u32 %v1014, %v1010
      %v1016 = vrot.slane %v1015, 4
      %v1018 = vshll.u32 %v811, 16
      %v1020 = vrot.slane %v1018, 5
      %v1021 = vsel %vm391, %v1016, %v1020
      %v1023 = vshrl.u32 %v812, 16
      %v1025 = vrot.slane %v1023, 4
      %v1026 = vshll.u32 %v812, 16
      %v1028 = vrot.slane %v1026, 5
      %v1029 = vor.u32 %v1025, %v1028
      %v1030 = vrot.slane %v1029, 4
      %v1032 = vshll.u32 %v813, 16
      %v1034 = vrot.slane %v1032, 5
      %v1035 = vsel %vm391, %v1030, %v1034
      %v1036 = vshrl.u32 %v813, 16
      %v1038 = vrot.slane %v1036, 4
      %v1039 = vor.u32 %v1038, %v1034
      %v1040 = vrot.slane %v1039, 4
      %v1042 = vshll.u32 %v814, 16
      %v1044 = vrot.slane %v1042, 5
      %v1045 = vsel %vm391, %v1040, %v1044
      %v1047 = vshrl.u32 %v815, 16
      %v1049 = vrot.slane %v1047, 4
      %v1050 = vshll.u32 %v815, 16
      %v1052 = vrot.slane %v1050, 5
      %v1053 = vor.u32 %v1049, %v1052
      %v1054 = vrot.slane %v1053, 4
      %v1056 = vshll.u32 %v816, 16
      %v1058 = vrot.slane %v1056, 5
      %v1059 = vsel %vm391, %v1054, %v1058
      %v1060 = vshrl.u32 %v816, 16
      %v1062 = vrot.slane %v1060, 4
      %v1063 = vor.u32 %v1062, %v1058
      %v1064 = vrot.slane %v1063, 4
      %v1066 = vshll.u32 %v817, 16
      %v1068 = vrot.slane %v1066, 5
      %v1069 = vsel %vm391, %v1064, %v1068
      %v1071 = vshrl.u32 %v818, 16
      %v1073 = vrot.slane %v1071, 4
      %v1074 = vshll.u32 %v818, 16
      %v1076 = vrot.slane %v1074, 5
      %v1077 = vor.u32 %v1073, %v1076
      %v1078 = vrot.slane %v1077, 4
      %v1080 = vshll.u32 %v819, 16
      %v1082 = vrot.slane %v1080, 5
      %v1083 = vsel %vm391, %v1078, %v1082
      %v1084 = vshrl.u32 %v819, 16
      %v1086 = vrot.slane %v1084, 4
      %v1087 = vor.u32 %v1086, %v1082
      %v1088 = vrot.slane %v1087, 4
      %v1090 = vshll.u32 %v820, 16
      %v1092 = vrot.slane %v1090, 5
      %v1093 = vsel %vm391, %v1088, %v1092
      %1094 = vrot.lane.b32.xlu0 %v915, 32
      %v1095 = vpop.permute.xlu0 %1094
      %1096 = vrot.lane.b32.xlu0 %v925, 32
      %v1097 = vpop.permute.xlu0 %1096
      %1098 = vrot.lane.b32.xlu0 %v939, 32
      %v1099 = vpop.permute.xlu0 %1098
      %1100 = vrot.lane.b32.xlu0 %v949, 32
      %v1101 = vpop.permute.xlu0 %1100
      %1102 = vrot.lane.b32.xlu0 %v963, 32
      %v1103 = vpop.permute.xlu0 %1102
      %1104 = vrot.lane.b32.xlu0 %v973, 32
      %v1105 = vpop.permute.xlu0 %1104
      %1106 = vrot.lane.b32.xlu0 %v987, 32
      %v1107 = vpop.permute.xlu0 %1106
      %1108 = vrot.lane.b32.xlu0 %v997, 32
      %v1109 = vpop.permute.xlu0 %1108
      %1110 = vrot.lane.b32.xlu0 %v1011, 32
      %v1111 = vpop.permute.xlu0 %1110
      %1112 = vrot.lane.b32.xlu0 %v1021, 32
      %v1113 = vpop.permute.xlu0 %1112
      %1114 = vrot.lane.b32.xlu0 %v1035, 32
      %v1115 = vpop.permute.xlu0 %1114
      %1116 = vrot.lane.b32.xlu0 %v1045, 32
      %v1117 = vpop.permute.xlu0 %1116
      %1118 = vrot.lane.b32.xlu0 %v1059, 32
      %v1119 = vpop.permute.xlu0 %1118
      %1120 = vrot.lane.b32.xlu0 %v1069, 32
      %v1121 = vpop.permute.xlu0 %1120
      %1122 = vrot.lane.b32.xlu0 %v1083, 32
      %v1123 = vpop.permute.xlu0 %1122
      %1124 = vrot.lane.b32.xlu0 %v1093, 32
      %v1125 = vpop.permute.xlu0 %1124
      %vm1142 = vcmask 322816
      %1143 = vst.msk [vmem:[#allocation2] sm:$0xf] %vm1142, %v1095
      %1144 = vst.msk [vmem:[#allocation2 + $0x4] sm:$0xf] %vm1142, %v1097
      %1145 = vst.msk [vmem:[#allocation2 + $0x8] sm:$0xf] %vm1142, %v1099
      %1146 = vst.msk [vmem:[#allocation2 + $0xc] sm:$0xf] %vm1142, %v1101
      %1147 = vst.msk [vmem:[#allocation2 + $0x10] sm:$0xf] %vm1142, %v1103
      %1148 = vst.msk [vmem:[#allocation2 + $0x14] sm:$0xf] %vm1142, %v1105
      %1149 = vst.msk [vmem:[#allocation2 + $0x18] sm:$0xf] %vm1142, %v1107
      %1150 = vst.msk [vmem:[#allocation2 + $0x1c] sm:$0xf] %vm1142, %v1109
      %1151 = vst.msk [vmem:[#allocation2 + $0x20] sm:$0xf] %vm1142, %v1111
      %1152 = vst.msk [vmem:[#allocation2 + $0x24] sm:$0xf] %vm1142, %v1113
      %1153 = vst.msk [vmem:[#allocation2 + $0x28] sm:$0xf] %vm1142, %v1115
      %1154 = vst.msk [vmem:[#allocation2 + $0x2c] sm:$0xf] %vm1142, %v1117
      %1155 = vst.msk [vmem:[#allocation2 + $0x30] sm:$0xf] %vm1142, %v1119
      %1156 = vst.msk [vmem:[#allocation2 + $0x34] sm:$0xf] %vm1142, %v1121
      %1157 = vst.msk [vmem:[#allocation2 + $0x38] sm:$0xf] %vm1142, %v1123
      %1158 = vst.msk [vmem:[#allocation2 + $0x3c] sm:$0xf] %vm1142, %v1125
      %v1167 = vrot.slane %v797, 5
      %v1168 = vrot.slane %v1167, 4
      %v1169 = vrot.slane %v798, 5
      %v1170 = vsel %vm675, %v1168, %v1169
      %v1171 = vrot.slane %v1169, 4
      %v1172 = vrot.slane %v799, 5
      %v1173 = vsel %vm675, %v1171, %v1172
      %v1174 = vrot.slane %v800, 5
      %v1175 = vrot.slane %v1174, 4
      %v1176 = vrot.slane %v801, 5
      %v1177 = vsel %vm675, %v1175, %v1176
      %v1178 = vrot.slane %v1176, 4
      %v1179 = vrot.slane %v802, 5
      %v1180 = vsel %vm675, %v1178, %v1179
      %v1181 = vrot.slane %v803, 5
      %v1182 = vrot.slane %v1181, 4
      %v1183 = vrot.slane %v804, 5
      %v1184 = vsel %vm675, %v1182, %v1183
      %v1185 = vrot.slane %v1183, 4
      %v1186 = vrot.slane %v805, 5
      %v1187 = vsel %vm675, %v1185, %v1186
      %v1188 = vrot.slane %v806, 5
      %v1189 = vrot.slane %v1188, 4
      %v1190 = vrot.slane %v807, 5
      %v1191 = vsel %vm675, %v1189, %v1190
      %v1192 = vrot.slane %v1190, 4
      %v1193 = vrot.slane %v808, 5
      %v1194 = vsel %vm675, %v1192, %v1193
      %v1195 = vrot.slane %v809, 5
      %v1196 = vrot.slane %v1195, 4
      %v1197 = vrot.slane %v810, 5
      %v1198 = vsel %vm675, %v1196, %v1197
      %v1199 = vrot.slane %v1197, 4
      %v1200 = vrot.slane %v811, 5
      %v1201 = vsel %vm675, %v1199, %v1200
      %v1202 = vrot.slane %v812, 5
      %v1203 = vrot.slane %v1202, 4
      %v1204 = vrot.slane %v813, 5
      %v1205 = vsel %vm675, %v1203, %v1204
      %v1206 = vrot.slane %v1204, 4
      %v1207 = vrot.slane %v814, 5
      %v1208 = vsel %vm675, %v1206, %v1207
      %v1209 = vrot.slane %v815, 5
      %v1210 = vrot.slane %v1209, 4
      %v1211 = vrot.slane %v816, 5
      %v1212 = vsel %vm675, %v1210, %v1211
      %v1213 = vrot.slane %v1211, 4
      %v1214 = vrot.slane %v817, 5
      %v1215 = vsel %vm675, %v1213, %v1214
      %v1216 = vrot.slane %v818, 5
      %v1217 = vrot.slane %v1216, 4
      %v1218 = vrot.slane %v819, 5
      %v1219 = vsel %vm675, %v1217, %v1218
      %v1220 = vrot.slane %v1218, 4
      %v1221 = vrot.slane %v820, 5
      %v1222 = vsel %vm675, %v1220, %v1221
      %1223 = vrot.lane.b32.xlu0 %v1170, 40
      %v1224 = vpop.permute.xlu0 %1223
      %1225 = vrot.lane.b32.xlu0 %v1173, 40
      %v1226 = vpop.permute.xlu0 %1225
      %1227 = vrot.lane.b32.xlu0 %v1177, 40
      %v1228 = vpop.permute.xlu0 %1227
      %1229 = vrot.lane.b32.xlu0 %v1180, 40
      %v1230 = vpop.permute.xlu0 %1229
      %1231 = vrot.lane.b32.xlu0 %v1184, 40
      %v1232 = vpop.permute.xlu0 %1231
      %1233 = vrot.lane.b32.xlu0 %v1187, 40
      %v1234 = vpop.permute.xlu0 %1233
      %1235 = vrot.lane.b32.xlu0 %v1191, 40
      %v1236 = vpop.permute.xlu0 %1235
      %1237 = vrot.lane.b32.xlu0 %v1194, 40
      %v1238 = vpop.permute.xlu0 %1237
      %1239 = vrot.lane.b32.xlu0 %v1198, 40
      %v1240 = vpop.permute.xlu0 %1239
      %1241 = vrot.lane.b32.xlu0 %v1201, 40
      %v1242 = vpop.permute.xlu0 %1241
      %1243 = vrot.lane.b32.xlu0 %v1205, 40
      %v1244 = vpop.permute.xlu0 %1243
      %1245 = vrot.lane.b32.xlu0 %v1208, 40
      %v1246 = vpop.permute.xlu0 %1245
      %1247 = vrot.lane.b32.xlu0 %v1212, 40
      %v1248 = vpop.permute.xlu0 %1247
      %1249 = vrot.lane.b32.xlu0 %v1215, 40
      %v1250 = vpop.permute.xlu0 %1249
      %1251 = vrot.lane.b32.xlu0 %v1219, 40
      %v1252 = vpop.permute.xlu0 %1251
      %1253 = vrot.lane.b32.xlu0 %v1222, 40
      %v1254 = vpop.permute.xlu0 %1253
      %vm1271 = vcmask 388416
      %1272 = vst.msk [vmem:[#allocation2] sm:$0xf] %vm1271, %v1224
      %1273 = vst.msk [vmem:[#allocation2 + $0x4] sm:$0xf] %vm1271, %v1226
      %1274 = vst.msk [vmem:[#allocation2 + $0x8] sm:$0xf] %vm1271, %v1228
      %1275 = vst.msk [vmem:[#allocation2 + $0xc] sm:$0xf] %vm1271, %v1230
      %1276 = vst.msk [vmem:[#allocation2 + $0x10] sm:$0xf] %vm1271, %v1232
      %1277 = vst.msk [vmem:[#allocation2 + $0x14] sm:$0xf] %vm1271, %v1234
      %1278 = vst.msk [vmem:[#allocation2 + $0x18] sm:$0xf] %vm1271, %v1236
      %1279 = vst.msk [vmem:[#allocation2 + $0x1c] sm:$0xf] %vm1271, %v1238
      %1280 = vst.msk [vmem:[#allocation2 + $0x20] sm:$0xf] %vm1271, %v1240
      %1281 = vst.msk [vmem:[#allocation2 + $0x24] sm:$0xf] %vm1271, %v1242
      %1282 = vst.msk [vmem:[#allocation2 + $0x28] sm:$0xf] %vm1271, %v1244
      %1283 = vst.msk [vmem:[#allocation2 + $0x2c] sm:$0xf] %vm1271, %v1246
      %1284 = vst.msk [vmem:[#allocation2 + $0x30] sm:$0xf] %vm1271, %v1248
      %1285 = vst.msk [vmem:[#allocation2 + $0x34] sm:$0xf] %vm1271, %v1250
      %1286 = vst.msk [vmem:[#allocation2 + $0x38] sm:$0xf] %vm1271, %v1252
      %1287 = vst.msk [vmem:[#allocation2 + $0x3c] sm:$0xf] %vm1271, %v1254
      %v1288 = vld [vmem:[%s334] sm:$0xf]
      %v1289 = vld [vmem:[%s334 + $0x4] sm:$0xf]
      %v1290 = vld [vmem:[%s334 + $0x8] sm:$0x1]
      %v1291 = vld [vmem:[%s334 + $0xc] sm:$0xf]
      %v1292 = vld [vmem:[%s334 + $0x10] sm:$0xf]
      %v1293 = vld [vmem:[%s334 + $0x14] sm:$0x1]
      %v1294 = vld [vmem:[%s334 + $0x18] sm:$0xf]
      %v1295 = vld [vmem:[%s334 + $0x1c] sm:$0xf]
      %v1296 = vld [vmem:[%s334 + $0x20] sm:$0x1]
      %v1297 = vld [vmem:[%s334 + $0x24] sm:$0xf]
      %v1298 = vld [vmem:[%s334 + $0x28] sm:$0xf]
      %v1299 = vld [vmem:[%s334 + $0x2c] sm:$0x1]
      %v1300 = vld [vmem:[%s334 + $0x30] sm:$0xf]
      %v1301 = vld [vmem:[%s334 + $0x34] sm:$0xf]
      %v1302 = vld [vmem:[%s334 + $0x38] sm:$0x1]
      %v1303 = vld [vmem:[%s334 + $0x3c] sm:$0xf]
      %v1304 = vld [vmem:[%s334 + $0x40] sm:$0xf]
      %v1305 = vld [vmem:[%s334 + $0x44] sm:$0x1]
      %v1306 = vld [vmem:[%s334 + $0x48] sm:$0xf]
      %v1307 = vld [vmem:[%s334 + $0x4c] sm:$0xf]
      %v1308 = vld [vmem:[%s334 + $0x50] sm:$0x1]
      %v1309 = vld [vmem:[%s334 + $0x54] sm:$0xf]
      %v1310 = vld [vmem:[%s334 + $0x58] sm:$0xf]
      %v1311 = vld [vmem:[%s334 + $0x5c] sm:$0x1]
      %1328 = vrot.lane.b32.xlu0 %v1288, 48
      %v1329 = vpop.permute.xlu0 %1328
      %1330 = vrot.lane.b32.xlu0 %v1289, 48
      %v1331 = vpop.permute.xlu0 %1330
      %1332 = vrot.lane.b32.xlu0 %v1291, 48
      %v1333 = vpop.permute.xlu0 %1332
      %1334 = vrot.lane.b32.xlu0 %v1292, 48
      %v1335 = vpop.permute.xlu0 %1334
      %1336 = vrot.lane.b32.xlu0 %v1294, 48
      %v1337 = vpop.permute.xlu0 %1336
      %1338 = vrot.lane.b32.xlu0 %v1295, 48
      %v1339 = vpop.permute.xlu0 %1338
      %1340 = vrot.lane.b32.xlu0 %v1297, 48
      %v1341 = vpop.permute.xlu0 %1340
      %1342 = vrot.lane.b32.xlu0 %v1298, 48
      %v1343 = vpop.permute.xlu0 %1342
      %1344 = vrot.lane.b32.xlu0 %v1300, 48
      %v1345 = vpop.permute.xlu0 %1344
      %1346 = vrot.lane.b32.xlu0 %v1301, 48
      %v1347 = vpop.permute.xlu0 %1346
      %1348 = vrot.lane.b32.xlu0 %v1303, 48
      %v1349 = vpop.permute.xlu0 %1348
      %1350 = vrot.lane.b32.xlu0 %v1304, 48
      %v1351 = vpop.permute.xlu0 %1350
      %1352 = vrot.lane.b32.xlu0 %v1306, 48
      %v1353 = vpop.permute.xlu0 %1352
      %1354 = vrot.lane.b32.xlu0 %v1307, 48
      %v1355 = vpop.permute.xlu0 %1354
      %1356 = vrot.lane.b32.xlu0 %v1309, 48
      %v1357 = vpop.permute.xlu0 %1356
      %1358 = vrot.lane.b32.xlu0 %v1310, 48
      %v1359 = vpop.permute.xlu0 %1358
      %vm1376 = vcmask 454016
      %1377 = vst.msk [vmem:[#allocation2] sm:$0xf] %vm1376, %v1329
      %1378 = vst.msk [vmem:[#allocation2 + $0x4] sm:$0xf] %vm1376, %v1331
      %1379 = vst.msk [vmem:[#allocation2 + $0x8] sm:$0xf] %vm1376, %v1333
      %1380 = vst.msk [vmem:[#allocation2 + $0xc] sm:$0xf] %vm1376, %v1335
      %1381 = vst.msk [vmem:[#allocation2 + $0x10] sm:$0xf] %vm1376, %v1337
      %1382 = vst.msk [vmem:[#allocation2 + $0x14] sm:$0xf] %vm1376, %v1339
      %1383 = vst.msk [vmem:[#allocation2 + $0x18] sm:$0xf] %vm1376, %v1341
      %1384 = vst.msk [vmem:[#allocation2 + $0x1c] sm:$0xf] %vm1376, %v1343
      %1385 = vst.msk [vmem:[#allocation2 + $0x20] sm:$0xf] %vm1376, %v1345
      %1386 = vst.msk [vmem:[#allocation2 + $0x24] sm:$0xf] %vm1376, %v1347
      %1387 = vst.msk [vmem:[#allocation2 + $0x28] sm:$0xf] %vm1376, %v1349
      %1388 = vst.msk [vmem:[#allocation2 + $0x2c] sm:$0xf] %vm1376, %v1351
      %1389 = vst.msk [vmem:[#allocation2 + $0x30] sm:$0xf] %vm1376, %v1353
      %1390 = vst.msk [vmem:[#allocation2 + $0x34] sm:$0xf] %vm1376, %v1355
      %1391 = vst.msk [vmem:[#allocation2 + $0x38] sm:$0xf] %vm1376, %v1357
      %1392 = vst.msk [vmem:[#allocation2 + $0x3c] sm:$0xf] %vm1376, %v1359
      %v1394 = vshrl.u32 %v1288, 16
      %v1396 = vrot.slane %v1394, 4
      %v1397 = vshll.u32 %v1288, 16
      %v1399 = vrot.slane %v1397, 5
      %v1400 = vor.u32 %v1396, %v1399
      %v1401 = vrot.slane %v1400, 4
      %v1403 = vshll.u32 %v1289, 16
      %v1405 = vrot.slane %v1403, 5
      %v1406 = vsel %vm391, %v1401, %v1405
      %v1407 = vshrl.u32 %v1289, 16
      %v1409 = vrot.slane %v1407, 4
      %v1410 = vor.u32 %v1409, %v1405
      %v1411 = vrot.slane %v1410, 4
      %v1413 = vshll.u32 %v1290, 16
      %v1415 = vrot.slane %v1413, 5
      %v1416 = vsel %vm391, %v1411, %v1415
      %v1418 = vshrl.u32 %v1291, 16
      %v1420 = vrot.slane %v1418, 4
      %v1421 = vshll.u32 %v1291, 16
      %v1423 = vrot.slane %v1421, 5
      %v1424 = vor.u32 %v1420, %v1423
      %v1425 = vrot.slane %v1424, 4
      %v1427 = vshll.u32 %v1292, 16
      %v1429 = vrot.slane %v1427, 5
      %v1430 = vsel %vm391, %v1425, %v1429
      %v1431 = vshrl.u32 %v1292, 16
      %v1433 = vrot.slane %v1431, 4
      %v1434 = vor.u32 %v1433, %v1429
      %v1435 = vrot.slane %v1434, 4
      %v1437 = vshll.u32 %v1293, 16
      %v1439 = vrot.slane %v1437, 5
      %v1440 = vsel %vm391, %v1435, %v1439
      %v1442 = vshrl.u32 %v1294, 16
      %v1444 = vrot.slane %v1442, 4
      %v1445 = vshll.u32 %v1294, 16
      %v1447 = vrot.slane %v1445, 5
      %v1448 = vor.u32 %v1444, %v1447
      %v1449 = vrot.slane %v1448, 4
      %v1451 = vshll.u32 %v1295, 16
      %v1453 = vrot.slane %v1451, 5
      %v1454 = vsel %vm391, %v1449, %v1453
      %v1455 = vshrl.u32 %v1295, 16
      %v1457 = vrot.slane %v1455, 4
      %v1458 = vor.u32 %v1457, %v1453
      %v1459 = vrot.slane %v1458, 4
      %v1461 = vshll.u32 %v1296, 16
      %v1463 = vrot.slane %v1461, 5
      %v1464 = vsel %vm391, %v1459, %v1463
      %v1466 = vshrl.u32 %v1297, 16
      %v1468 = vrot.slane %v1466, 4
      %v1469 = vshll.u32 %v1297, 16
      %v1471 = vrot.slane %v1469, 5
      %v1472 = vor.u32 %v1468, %v1471
      %v1473 = vrot.slane %v1472, 4
      %v1475 = vshll.u32 %v1298, 16
      %v1477 = vrot.slane %v1475, 5
      %v1478 = vsel %vm391, %v1473, %v1477
      %v1479 = vshrl.u32 %v1298, 16
      %v1481 = vrot.slane %v1479, 4
      %v1482 = vor.u32 %v1481, %v1477
      %v1483 = vrot.slane %v1482, 4
      %v1485 = vshll.u32 %v1299, 16
      %v1487 = vrot.slane %v1485, 5
      %v1488 = vsel %vm391, %v1483, %v1487
      %v1490 = vshrl.u32 %v1300, 16
      %v1492 = vrot.slane %v1490, 4
      %v1493 = vshll.u32 %v1300, 16
      %v1495 = vrot.slane %v1493, 5
      %v1496 = vor.u32 %v1492, %v1495
      %v1497 = vrot.slane %v1496, 4
      %v1499 = vshll.u32 %v1301, 16
      %v1501 = vrot.slane %v1499, 5
      %v1502 = vsel %vm391, %v1497, %v1501
      %v1503 = vshrl.u32 %v1301, 16
      %v1505 = vrot.slane %v1503, 4
      %v1506 = vor.u32 %v1505, %v1501
      %v1507 = vrot.slane %v1506, 4
      %v1509 = vshll.u32 %v1302, 16
      %v1511 = vrot.slane %v1509, 5
      %v1512 = vsel %vm391, %v1507, %v1511
      %v1514 = vshrl.u32 %v1303, 16
      %v1516 = vrot.slane %v1514, 4
      %v1517 = vshll.u32 %v1303, 16
      %v1519 = vrot.slane %v1517, 5
      %v1520 = vor.u32 %v1516, %v1519
      %v1521 = vrot.slane %v1520, 4
      %v1523 = vshll.u32 %v1304, 16
      %v1525 = vrot.slane %v1523, 5
      %v1526 = vsel %vm391, %v1521, %v1525
      %v1527 = vshrl.u32 %v1304, 16
      %v1529 = vrot.slane %v1527, 4
      %v1530 = vor.u32 %v1529, %v1525
      %v1531 = vrot.slane %v1530, 4
      %v1533 = vshll.u32 %v1305, 16
      %v1535 = vrot.slane %v1533, 5
      %v1536 = vsel %vm391, %v1531, %v1535
      %v1538 = vshrl.u32 %v1306, 16
      %v1540 = vrot.slane %v1538, 4
      %v1541 = vshll.u32 %v1306, 16
      %v1543 = vrot.slane %v1541, 5
      %v1544 = vor.u32 %v1540, %v1543
      %v1545 = vrot.slane %v1544, 4
      %v1547 = vshll.u32 %v1307, 16
      %v1549 = vrot.slane %v1547, 5
      %v1550 = vsel %vm391, %v1545, %v1549
      %v1551 = vshrl.u32 %v1307, 16
      %v1553 = vrot.slane %v1551, 4
      %v1554 = vor.u32 %v1553, %v1549
      %v1555 = vrot.slane %v1554, 4
      %v1557 = vshll.u32 %v1308, 16
      %v1559 = vrot.slane %v1557, 5
      %v1560 = vsel %vm391, %v1555, %v1559
      %v1562 = vshrl.u32 %v1309, 16
      %v1564 = vrot.slane %v1562, 4
      %v1565 = vshll.u32 %v1309, 16
      %v1567 = vrot.slane %v1565, 5
      %v1568 = vor.u32 %v1564, %v1567
      %v1569 = vrot.slane %v1568, 4
      %v1571 = vshll.u32 %v1310, 16
      %v1573 = vrot.slane %v1571, 5
      %v1574 = vsel %vm391, %v1569, %v1573
      %v1575 = vshrl.u32 %v1310, 16
      %v1577 = vrot.slane %v1575, 4
      %v1578 = vor.u32 %v1577, %v1573
      %v1579 = vrot.slane %v1578, 4
      %v1581 = vshll.u32 %v1311, 16
      %v1583 = vrot.slane %v1581, 5
      %v1584 = vsel %vm391, %v1579, %v1583
      %1585 = vrot.lane.b32.xlu0 %v1406, 56
      %v1586 = vpop.permute.xlu0 %1585
      %1587 = vrot.lane.b32.xlu0 %v1416, 56
      %v1588 = vpop.permute.xlu0 %1587
      %1589 = vrot.lane.b32.xlu0 %v1430, 56
      %v1590 = vpop.permute.xlu0 %1589
      %1591 = vrot.lane.b32.xlu0 %v1440, 56
      %v1592 = vpop.permute.xlu0 %1591
      %1593 = vrot.lane.b32.xlu0 %v1454, 56
      %v1594 = vpop.permute.xlu0 %1593
      %1595 = vrot.lane.b32.xlu0 %v1464, 56
      %v1596 = vpop.permute.xlu0 %1595
      %1597 = vrot.lane.b32.xlu0 %v1478, 56
      %v1598 = vpop.permute.xlu0 %1597
      %1599 = vrot.lane.b32.xlu0 %v1488, 56
      %v1600 = vpop.permute.xlu0 %1599
      %1601 = vrot.lane.b32.xlu0 %v1502, 56
      %v1602 = vpop.permute.xlu0 %1601
      %1603 = vrot.lane.b32.xlu0 %v1512, 56
      %v1604 = vpop.permute.xlu0 %1603
      %1605 = vrot.lane.b32.xlu0 %v1526, 56
      %v1606 = vpop.permute.xlu0 %1605
      %1607 = vrot.lane.b32.xlu0 %v1536, 56
      %v1608 = vpop.permute.xlu0 %1607
      %1609 = vrot.lane.b32.xlu0 %v1550, 56
      %v1610 = vpop.permute.xlu0 %1609
      %1611 = vrot.lane.b32.xlu0 %v1560, 56
      %v1612 = vpop.permute.xlu0 %1611
      %1613 = vrot.lane.b32.xlu0 %v1574, 56
      %v1614 = vpop.permute.xlu0 %1613
      %1615 = vrot.lane.b32.xlu0 %v1584, 56
      %v1616 = vpop.permute.xlu0 %1615
      %vm1633 = vcmask 519616
      %1634 = vst.msk [vmem:[#allocation2] sm:$0xf] %vm1633, %v1586
      %1635 = vst.msk [vmem:[#allocation2 + $0x4] sm:$0xf] %vm1633, %v1588
      %1636 = vst.msk [vmem:[#allocation2 + $0x8] sm:$0xf] %vm1633, %v1590
      %1637 = vst.msk [vmem:[#allocation2 + $0xc] sm:$0xf] %vm1633, %v1592
      %1638 = vst.msk [vmem:[#allocation2 + $0x10] sm:$0xf] %vm1633, %v1594
      %1639 = vst.msk [vmem:[#allocation2 + $0x14] sm:$0xf] %vm1633, %v1596
      %1640 = vst.msk [vmem:[#allocation2 + $0x18] sm:$0xf] %vm1633, %v1598
      %1641 = vst.msk [vmem:[#allocation2 + $0x1c] sm:$0xf] %vm1633, %v1600
      %1642 = vst.msk [vmem:[#allocation2 + $0x20] sm:$0xf] %vm1633, %v1602
      %1643 = vst.msk [vmem:[#allocation2 + $0x24] sm:$0xf] %vm1633, %v1604
      %1644 = vst.msk [vmem:[#allocation2 + $0x28] sm:$0xf] %vm1633, %v1606
      %1645 = vst.msk [vmem:[#allocation2 + $0x2c] sm:$0xf] %vm1633, %v1608
      %1646 = vst.msk [vmem:[#allocation2 + $0x30] sm:$0xf] %vm1633, %v1610
      %1647 = vst.msk [vmem:[#allocation2 + $0x34] sm:$0xf] %vm1633, %v1612
      %1648 = vst.msk [vmem:[#allocation2 + $0x38] sm:$0xf] %vm1633, %v1614
      %1649 = vst.msk [vmem:[#allocation2 + $0x3c] sm:$0xf] %vm1633, %v1616
      %v1658 = vrot.slane %v1288, 5
      %v1659 = vrot.slane %v1658, 4
      %v1660 = vrot.slane %v1289, 5
      %v1661 = vsel %vm675, %v1659, %v1660
      %v1662 = vrot.slane %v1660, 4
      %v1663 = vrot.slane %v1290, 5
      %v1664 = vsel %vm675, %v1662, %v1663
      %v1665 = vrot.slane %v1291, 5
      %v1666 = vrot.slane %v1665, 4
      %v1667 = vrot.slane %v1292, 5
      %v1668 = vsel %vm675, %v1666, %v1667
      %v1669 = vrot.slane %v1667, 4
      %v1670 = vrot.slane %v1293, 5
      %v1671 = vsel %vm675, %v1669, %v1670
      %v1672 = vrot.slane %v1294, 5
      %v1673 = vrot.slane %v1672, 4
      %v1674 = vrot.slane %v1295, 5
      %v1675 = vsel %vm675, %v1673, %v1674
      %v1676 = vrot.slane %v1674, 4
      %v1677 = vrot.slane %v1296, 5
      %v1678 = vsel %vm675, %v1676, %v1677
      %v1679 = vrot.slane %v1297, 5
      %v1680 = vrot.slane %v1679, 4
      %v1681 = vrot.slane %v1298, 5
      %v1682 = vsel %vm675, %v1680, %v1681
      %v1683 = vrot.slane %v1681, 4
      %v1684 = vrot.slane %v1299, 5
      %v1685 = vsel %vm675, %v1683, %v1684
      %v1686 = vrot.slane %v1300, 5
      %v1687 = vrot.slane %v1686, 4
      %v1688 = vrot.slane %v1301, 5
      %v1689 = vsel %vm675, %v1687, %v1688
      %v1690 = vrot.slane %v1688, 4
      %v1691 = vrot.slane %v1302, 5
      %v1692 = vsel %vm675, %v1690, %v1691
      %v1693 = vrot.slane %v1303, 5
      %v1694 = vrot.slane %v1693, 4
      %v1695 = vrot.slane %v1304, 5
      %v1696 = vsel %vm675, %v1694, %v1695
      %v1697 = vrot.slane %v1695, 4
      %v1698 = vrot.slane %v1305, 5
      %v1699 = vsel %vm675, %v1697, %v1698
      %v1700 = vrot.slane %v1306, 5
      %v1701 = vrot.slane %v1700, 4
      %v1702 = vrot.slane %v1307, 5
      %v1703 = vsel %vm675, %v1701, %v1702
      %v1704 = vrot.slane %v1702, 4
      %v1705 = vrot.slane %v1308, 5
      %v1706 = vsel %vm675, %v1704, %v1705
      %v1707 = vrot.slane %v1309, 5
      %v1708 = vrot.slane %v1707, 4
      %v1709 = vrot.slane %v1310, 5
      %v1710 = vsel %vm675, %v1708, %v1709
      %v1711 = vrot.slane %v1709, 4
      %v1712 = vrot.slane %v1311, 5
      %v1713 = vsel %vm675, %v1711, %v1712
      %1714 = vrot.lane.b32.xlu0 %v1661, 64
      %v1715 = vpop.permute.xlu0 %1714
      %1716 = vrot.lane.b32.xlu0 %v1664, 64
      %v1717 = vpop.permute.xlu0 %1716
      %1718 = vrot.lane.b32.xlu0 %v1668, 64
      %v1719 = vpop.permute.xlu0 %1718
      %1720 = vrot.lane.b32.xlu0 %v1671, 64
      %v1721 = vpop.permute.xlu0 %1720
      %1722 = vrot.lane.b32.xlu0 %v1675, 64
      %v1723 = vpop.permute.xlu0 %1722
      %1724 = vrot.lane.b32.xlu0 %v1678, 64
      %v1725 = vpop.permute.xlu0 %1724
      %1726 = vrot.lane.b32.xlu0 %v1682, 64
      %v1727 = vpop.permute.xlu0 %1726
      %1728 = vrot.lane.b32.xlu0 %v1685, 64
      %v1729 = vpop.permute.xlu0 %1728
      %1730 = vrot.lane.b32.xlu0 %v1689, 64
      %v1731 = vpop.permute.xlu0 %1730
      %1732 = vrot.lane.b32.xlu0 %v1692, 64
      %v1733 = vpop.permute.xlu0 %1732
      %1734 = vrot.lane.b32.xlu0 %v1696, 64
      %v1735 = vpop.permute.xlu0 %1734
      %1736 = vrot.lane.b32.xlu0 %v1699, 64
      %v1737 = vpop.permute.xlu0 %1736
      %1738 = vrot.lane.b32.xlu0 %v1703, 64
      %v1739 = vpop.permute.xlu0 %1738
      %1740 = vrot.lane.b32.xlu0 %v1706, 64
      %v1741 = vpop.permute.xlu0 %1740
      %1742 = vrot.lane.b32.xlu0 %v1710, 64
      %v1743 = vpop.permute.xlu0 %1742
      %1744 = vrot.lane.b32.xlu0 %v1713, 64
      %v1745 = vpop.permute.xlu0 %1744
      %vm1762 = vcmask 585216
      %1763 = vst.msk [vmem:[#allocation2] sm:$0xf] %vm1762, %v1715
      %1764 = vst.msk [vmem:[#allocation2 + $0x4] sm:$0xf] %vm1762, %v1717
      %1765 = vst.msk [vmem:[#allocation2 + $0x8] sm:$0xf] %vm1762, %v1719
      %1766 = vst.msk [vmem:[#allocation2 + $0xc] sm:$0xf] %vm1762, %v1721
      %1767 = vst.msk [vmem:[#allocation2 + $0x10] sm:$0xf] %vm1762, %v1723
      %1768 = vst.msk [vmem:[#allocation2 + $0x14] sm:$0xf] %vm1762, %v1725
      %1769 = vst.msk [vmem:[#allocation2 + $0x18] sm:$0xf] %vm1762, %v1727
      %1770 = vst.msk [vmem:[#allocation2 + $0x1c] sm:$0xf] %vm1762, %v1729
      %1771 = vst.msk [vmem:[#allocation2 + $0x20] sm:$0xf] %vm1762, %v1731
      %1772 = vst.msk [vmem:[#allocation2 + $0x24] sm:$0xf] %vm1762, %v1733
      %1773 = vst.msk [vmem:[#allocation2 + $0x28] sm:$0xf] %vm1762, %v1735
      %1774 = vst.msk [vmem:[#allocation2 + $0x2c] sm:$0xf] %vm1762, %v1737
      %1775 = vst.msk [vmem:[#allocation2 + $0x30] sm:$0xf] %vm1762, %v1739
      %1776 = vst.msk [vmem:[#allocation2 + $0x34] sm:$0xf] %vm1762, %v1741
      %1777 = vst.msk [vmem:[#allocation2 + $0x38] sm:$0xf] %vm1762, %v1743
      %1778 = vst.msk [vmem:[#allocation2 + $0x3c] sm:$0xf] %vm1762, %v1745
      %v1779 = vld [vmem:[#allocation2] sm:$0xf]
      %v1780 = vld [vmem:[#allocation2 + $0x4] sm:$0xf]
      %v1781 = vld [vmem:[#allocation2 + $0x8] sm:$0xf]
      %v1782 = vld [vmem:[#allocation2 + $0xc] sm:$0xf]
      %v1783 = vld [vmem:[#allocation2 + $0x10] sm:$0xf]
      %v1784 = vld [vmem:[#allocation2 + $0x14] sm:$0xf]
      %v1785 = vld [vmem:[#allocation2 + $0x18] sm:$0xf]
      %v1786 = vld [vmem:[#allocation2 + $0x1c] sm:$0xf]
      %v1787 = vld [vmem:[#allocation2 + $0x20] sm:$0xf]
      %v1788 = vld [vmem:[#allocation2 + $0x24] sm:$0xf]
      %v1789 = vld [vmem:[#allocation2 + $0x28] sm:$0xf]
      %v1790 = vld [vmem:[#allocation2 + $0x2c] sm:$0xf]
      %v1791 = vld [vmem:[#allocation2 + $0x30] sm:$0xf]
      %v1792 = vld [vmem:[#allocation2 + $0x34] sm:$0xf]
      %v1793 = vld [vmem:[#allocation2 + $0x38] sm:$0xf]
      %v1794 = vld [vmem:[#allocation2 + $0x3c] sm:$0xf]
      %v1795 = vld [vmem:[%s3] sm:$0xf]
      %v1796 = vld [vmem:[%s3 + $0x4] sm:$0xf]
      %v1797 = vld [vmem:[%s3 + $0x8] sm:$0xf]
      %v1798 = vld [vmem:[%s3 + $0xc] sm:$0xf]
      %v1799 = vld [vmem:[%s3 + $0x10] sm:$0xf]
      %v1800 = vld [vmem:[%s3 + $0x14] sm:$0xf]
      %v1801 = vld [vmem:[%s3 + $0x18] sm:$0xf]
      %v1802 = vld [vmem:[%s3 + $0x1c] sm:$0xf]
      %v1803 = vld [vmem:[%s3 + $0x20] sm:$0xf]
      %v1804 = vld [vmem:[%s4] sm:$0x1]
      %v1806 = vlaneseq
      %v1807 = vshrl.u32 %v1806, 7
      %v1808 = vsub.s32 0, %v1807
      %v1809 = vrot.slane %v1804, %v1808
      %v1827 = vunpack.c.l.b16 %v1779
      %v1828 = vunpack.c.l.b16 %v1780
      %v1829 = vunpack.c.l.b16 %v1781
      %v1830 = vunpack.c.l.b16 %v1782
      %v1831 = vunpack.c.l.b16 %v1783
      %v1832 = vunpack.c.l.b16 %v1784
      %v1833 = vunpack.c.l.b16 %v1785
      %v1834 = vunpack.c.l.b16 %v1786
      %v1835 = vunpack.c.l.b16 %v1787
      %v1836 = vunpack.c.l.b16 %v1788
      %v1837 = vunpack.c.l.b16 %v1789
      %v1838 = vunpack.c.l.b16 %v1790
      %v1839 = vunpack.c.l.b16 %v1791
      %v1840 = vunpack.c.l.b16 %v1792
      %v1841 = vunpack.c.l.b16 %v1793
      %v1842 = vunpack.c.l.b16 %v1794
      %v1843 = vpack.c.b16 %v1828, %v1827
      %v1844 = vpack.c.b16 %v1830, %v1829
      %v1845 = vpack.c.b16 %v1832, %v1831
      %v1846 = vpack.c.b16 %v1834, %v1833
      %v1847 = vpack.c.b16 %v1836, %v1835
      %v1848 = vpack.c.b16 %v1838, %v1837
      %v1849 = vpack.c.b16 %v1840, %v1839
      %v1850 = vpack.c.b16 %v1842, %v1841
      %v1860 = vunpack.c.l.b16 %v1795
      %v1861 = vunpack.c.l.b16 %v1796
      %v1862 = vunpack.c.l.b16 %v1797
      %v1863 = vunpack.c.l.b16 %v1798
      %v1864 = vunpack.c.l.b16 %v1799
      %v1865 = vunpack.c.l.b16 %v1800
      %v1866 = vunpack.c.l.b16 %v1801
      %v1867 = vunpack.c.l.b16 %v1802
      %v1868 = vunpack.c.l.b16 %v1803
      %v1869 = vpack.c.b16 %v1861, %v1860
      %v1870 = vpack.c.b16 %v1863, %v1862
      %v1871 = vpack.c.b16 %v1865, %v1864
      %v1872 = vpack.c.b16 %v1867, %v1866
      %v1873 = vpack.c.b16 %v1868, %v1868
      %vm1878 = vcmask 588800
      %v1880 = vsel %vm1878, %v1843, 0
      %v1883 = vsel %vm1878, %v1844, 0
      %v1886 = vsel %vm1878, %v1845, 0
      %v1889 = vsel %vm1878, %v1846, 0
      %v1892 = vsel %vm1878, %v1847, 0
      %v1895 = vsel %vm1878, %v1848, 0
      %v1898 = vsel %vm1878, %v1849, 0
      %v1901 = vsel %vm1878, %v1850, 0
      %vm1903 = vcmask 1043456
      %v1905 = vsel %vm1903, %v1873, 0
      %1907 = vmatprep.subr.bf16.mxu0 0
      %1908 = vmatpush1.bf16.msra.mxu0 0
      %1909 = vmatprep.subr.bf16.mxu0 0
      %1910 = vmatpush1.bf16.msra.mxu0 0
      %1911 = vmatprep.subr.bf16.mxu0 0
      %1912 = vmatpush1.bf16.msra.mxu0 0
      %1913 = vmatprep.subr.bf16.mxu0 0
      %1914 = vmatpush1.bf16.msra.mxu0 %v1905
      %1915 = vmatprep.subr.bf16.mxu0 0
      %1916 = vmatpush1.bf16.msra.mxu0 %v1872
      %1917 = vmatprep.subr.bf16.mxu0 0
      %1918 = vmatpush1.bf16.msra.mxu0 %v1871
      %1919 = vmatprep.subr.bf16.mxu0 0
      %1920 = vmatpush1.bf16.msra.mxu0 %v1870
      %1921 = vmatprep.subr.bf16.mxu0 0
      %1922 = vmatpush1.bf16.msra.mxu0 %v1869
      %1923 = vmatprep.subr.bf16.mxu0 0
      %1924 = vmatpush2.bf16.msra.mxu0 0
      %1925 = vmatprep.subr.bf16.mxu0 0
      %1926 = vmatpush2.bf16.msra.mxu0 0
      %1927 = vmatprep.subr.bf16.mxu0 0
      %1928 = vmatpush2.bf16.msra.mxu0 0
      %1929 = vmatprep.subr.bf16.mxu0 0
      %1930 = vmatpush2.bf16.msra.mxu0 0
      %1931 = vmatprep.subr.bf16.mxu0 0
      %1932 = vmatpush2.bf16.msra.mxu0 0
      %1933 = vmatprep.subr.bf16.mxu0 0
      %1934 = vmatpush2.bf16.msra.mxu0 0
      %1935 = vmatprep.subr.bf16.mxu0 0
      %1936 = vmatpush2.bf16.msra.mxu0 0
      %1937 = vmatprep.subr.bf16.mxu0 0
      %1938 = vmatpush2.bf16.msra.mxu0 0
      %1939 = vmatprep.mubr.bf16.mxu0 0
      %1940 = vmatmul.mubr.bf16.gmra.mxu0 %v1880
      %v1941 = vpop.f32.mrf.mxu0
      %v1942 = vadd.f32 %v1809, %v1941
      %v1943 = vpop.f32.mrf.mxu0
      %v1944 = vpop.f32.mrf.mxu0
      %v1945 = vadd.f32 %v1809, %v1944
      %v1946 = vpop.f32.mrf.mxu0
      %1947 = vmatprep.mubr.bf16.mxu0 0
      %1948 = vmatmul.mubr.bf16.gmra.mxu0 %v1883
      %v1949 = vpop.f32.mrf.mxu0
      %v1950 = vadd.f32 %v1809, %v1949
      %v1951 = vpop.f32.mrf.mxu0
      %v1952 = vpop.f32.mrf.mxu0
      %v1953 = vadd.f32 %v1809, %v1952
      %v1954 = vpop.f32.mrf.mxu0
      %1955 = vmatprep.mubr.bf16.mxu0 0
      %1956 = vmatmul.mubr.bf16.gmra.mxu0 %v1886
      %v1957 = vpop.f32.mrf.mxu0
      %v1958 = vadd.f32 %v1809, %v1957
      %v1959 = vpop.f32.mrf.mxu0
      %v1960 = vpop.f32.mrf.mxu0
      %v1961 = vadd.f32 %v1809, %v1960
      %v1962 = vpop.f32.mrf.mxu0
      %1963 = vmatprep.mubr.bf16.mxu0 0
      %1964 = vmatmul.mubr.bf16.gmra.mxu0 %v1889
      %v1965 = vpop.f32.mrf.mxu0
      %v1966 = vadd.f32 %v1809, %v1965
      %v1967 = vpop.f32.mrf.mxu0
      %v1968 = vpop.f32.mrf.mxu0
      %v1969 = vadd.f32 %v1809, %v1968
      %v1970 = vpop.f32.mrf.mxu0
      %1971 = vmatprep.mubr.bf16.mxu0 0
      %1972 = vmatmul.mubr.bf16.gmra.mxu0 %v1892
      %v1973 = vpop.f32.mrf.mxu0
      %v1974 = vadd.f32 %v1809, %v1973
      %v1975 = vpop.f32.mrf.mxu0
      %v1976 = vpop.f32.mrf.mxu0
      %v1977 = vadd.f32 %v1809, %v1976
      %v1978 = vpop.f32.mrf.mxu0
      %1979 = vmatprep.mubr.bf16.mxu0 0
      %1980 = vmatmul.mubr.bf16.gmra.mxu0 %v1895
      %v1981 = vpop.f32.mrf.mxu0
      %v1982 = vadd.f32 %v1809, %v1981
      %v1983 = vpop.f32.mrf.mxu0
      %v1984 = vpop.f32.mrf.mxu0
      %v1985 = vadd.f32 %v1809, %v1984
      %v1986 = vpop.f32.mrf.mxu0
      %1987 = vmatprep.mubr.bf16.mxu0 0
      %1988 = vmatmul.mubr.bf16.gmra.mxu0 %v1898
      %v1989 = vpop.f32.mrf.mxu0
      %v1990 = vadd.f32 %v1809, %v1989
      %v1991 = vpop.f32.mrf.mxu0
      %v1992 = vpop.f32.mrf.mxu0
      %v1993 = vadd.f32 %v1809, %v1992
      %v1994 = vpop.f32.mrf.mxu0
      %1995 = vmatprep.mubr.bf16.mxu0 0
      %1996 = vmatmul.mubr.bf16.gmra.mxu0 %v1901
      %v1997 = vpop.f32.mrf.mxu0
      %v1998 = vadd.f32 %v1809, %v1997
      %v1999 = vpop.f32.mrf.mxu0
      %v2000 = vpop.f32.mrf.mxu0
      %v2001 = vadd.f32 %v1809, %v2000
      %v2002 = vpop.f32.mrf.mxu0
      %2003 = vdwg.mxu0
      %v2004 = vmax.f32 %v1942, 0.0
      %v2005 = vmax.f32 %v1945, 0.0
      %v2006 = vmax.f32 %v1950, 0.0
      %v2007 = vmax.f32 %v1953, 0.0
      %v2008 = vmax.f32 %v1958, 0.0
      %v2009 = vmax.f32 %v1961, 0.0
      %v2010 = vmax.f32 %v1966, 0.0
      %v2011 = vmax.f32 %v1969, 0.0
      %v2012 = vmax.f32 %v1974, 0.0
      %v2013 = vmax.f32 %v1977, 0.0
      %v2014 = vmax.f32 %v1982, 0.0
      %v2015 = vmax.f32 %v1985, 0.0
      %v2016 = vmax.f32 %v1990, 0.0
      %v2017 = vmax.f32 %v1993, 0.0
      %v2018 = vmax.f32 %v1998, 0.0
      %v2019 = vmax.f32 %v2001, 0.0
      %2020 = vst [vmem:[%s345] sm:$0xff] %v2004
      %2021 = vst [vmem:[%s345 + $0x8] sm:$0xff] %v2005
      %2022 = vst [vmem:[%s345 + $0x10] sm:$0xff] %v2006
      %2023 = vst [vmem:[%s345 + $0x18] sm:$0xff] %v2007
      %2024 = vst [vmem:[%s345 + $0x20] sm:$0xff] %v2008
      %2025 = vst [vmem:[%s345 + $0x28] sm:$0xff] %v2009
      %2026 = vst [vmem:[%s345 + $0x30] sm:$0xff] %v2010
      %2027 = vst [vmem:[%s345 + $0x38] sm:$0xff] %v2011
      %2028 = vst [vmem:[%s345 + $0x40] sm:$0xff] %v2012
      %2029 = vst [vmem:[%s345 + $0x48] sm:$0xff] %v2013
      %2030 = vst [vmem:[%s345 + $0x50] sm:$0xff] %v2014
      %2031 = vst [vmem:[%s345 + $0x58] sm:$0xff] %v2015
      %2032 = vst [vmem:[%s345 + $0x60] sm:$0xff] %v2016
      %2033 = vst [vmem:[%s345 + $0x68] sm:$0xff] %v2017
      %2034 = vst [vmem:[%s345 + $0x70] sm:$0xff] %v2018
      %2035 = vst [vmem:[%s345 + $0x78] sm:$0xff] %v2019
      %s2036 = smul.u32 8, %s21
      %p2037 = scmp.lt.s32.totalorder %s20, 1
      %s2038 = scalar_select %p2037, %s20, 1
      %p2039 = scmp.lt.s32.totalorder %s2036, 15
      %s2040 = scalar_select %p2039, %s2036, 15
      %s2041 = smul.addr %s2040, 2
      %s2042 = smul.addr %s2038, 32
      %s2043 = sadd.s32 %s2041, %s2042
      %s2044 = smul.addr %s2043, 8
      %s2045 = scalar_lea.vmem %s5, %s2044
      // Predicated region
      $region41: #{conv_relu.1} parent=39 // pred_check
        %p2046 = pneg %p174
      $region42: #{conv_relu.1} parent=39 // pred_check_branch
        %2048 = sbr.rel (%p2046) target = $region44
      $region43: #{conv_relu.1} parent=39 // pred_region
        %s2049 = smul.u32 8, %s21
      $region44: #{conv_relu.1} parent=39 // pred_fallthru
        _
    $region40: #{conv_relu.1} parent=5 // pred_fallthru
      _
    %p2050 = scmp.le.s32.totalorder 2, %s11
    // Predicated region
    $region45: #{conv_relu.1} parent=5 // pred_check
      %p2051 = pneg %p2050
    $region46: #{conv_relu.1} parent=5 // pred_check_branch
      %2053 = sbr.rel (%p2051) target = $region48
    $region47: #{conv_relu.1} parent=5 // pred_region
      %s2054 = ssub.s32 %s11, 2
      // Predicated region
      $region49: #{conv_relu.1} parent=47 // pred_check
        %p2055 = pneg %p180
      $region50: #{conv_relu.1} parent=47 // pred_check_branch
        %2057 = sbr.rel (%p2055) target = $region52
      $region51: #{conv_relu.1} parent=47 // pred_region
        %s2058 = smul.u32 8, %s23
        %p2059 = scmp.lt.s32.totalorder %s22, 1
        %s2060 = scalar_select %p2059, %s22, 1
        %p2061 = scmp.lt.s32.totalorder %s2058, 15
        %s2062 = scalar_select %p2061, %s2058, 15
        %s2063 = smul.addr %s2062, 2
        %s2064 = smul.addr %s2060, 32
        %s2065 = sadd.s32 %s2063, %s2064
        %s2066 = smul.addr %s2065, 8
        %s2067 = scalar_lea.vmem %s5, %s2066
      $region52: #{conv_relu.1} parent=47 // pred_fallthru
        _
    $region48: #{conv_relu.1} parent=5 // pred_fallthru
      _
  $region6: #{conv_relu.1} parent=0 // loop_footer
    %s15 = sadd.s32 1, %s11
  $region7: #{conv_relu.1} parent=0 // loop_footer_branch
    %10 = sbr.rel target = $region3
  $region8: #{conv_relu.1} parent=0 // loop_exit
    _

</llo_original>
